<compile_context>
chip_gen: v7x
topology: tpu7x:2x2x1
jax: 0.10.0
libtpu: 0.0.40
codegen_flags: <defaults>
</compile_context>

<pallas_src>
import functools
import math

import numpy as np
import jax
import jax.numpy as jnp
from jax.experimental import pallas as pl
from jax.experimental.pallas import tpu as pltpu

# ----------------- config (mirrors the PyTorch module __init__) -------------
NUM_NODES   = 8          # config.dataset.nodes_num
NODE_FEAS   = 4          # config.dataset.node_features
TOTAL_LEN   = 16         # config.dataset.graph_learning_length
CONV_DIM    = [8, 16]    # config.graph_learning.conv_dim
KERNEL_SIZE = [3, 3]     # config.graph_learning.kernel_size
STRIDE      = [1, 2]     # config.graph_learning.stride
HIDDEN_DIM  = 32         # config.graph_learning.hidden_dim
N_HEAD      = 2          # config.graph_learning.n_head
SAMPLING    = "Gumbel_softmax"
LN_EPS      = 1e-5
D_K         = HIDDEN_DIM // N_HEAD

# Conv1d output lengths (floor((L - K)/stride) + 1), as in the module's probe.
OUT_SIZE = []
_l = TOTAL_LEN
for _k, _s in zip(KERNEL_SIZE, STRIDE):
    _l = (_l - _k) // _s + 1
    OUT_SIZE.append(_l)
FC_IN = OUT_SIZE[-1] * CONV_DIM[-1]          # 16 * 6 = 96


# ------------------------------- fused kernel --------------------------------
def _fused_kernel(x_ref,
                  t0_ref, b0_ref, s0_ref, g0_ref, be0_ref,
                  t1_ref, b1_ref, s1_ref, g1_ref, be1_ref,
                  fcw_ref, fcb_ref, gfc_ref, befc_ref,
                  wqk_ref, bqk_ref,
                  gw_ref, gb_ref,
                  out_ref, attn_ref):
    """Entire forward pass; everything VMEM-resident, single program."""
    f32 = jnp.float32

    def conv_relu_ln(a, t_ref, b_ref, s_ref, g_ref, be_ref):
        # a: (N, Cin*Lin) flat.  Conv1d as one 2-D MXU dot with a Toeplitz matrix.
        y = jnp.dot(a, t_ref[...], preferred_element_type=f32) + b_ref[...]
        y = jnp.maximum(y, 0.0)                                  # ReLU
        # LayerNorm over the length dim, per (node, channel), without reshapes:
        # s_ref is block-diagonal (Cout*Lout, Cout*Lout) with 1/Lout blocks,
        # so (y @ s) broadcasts each channel's length-mean back to every lane.
        mu = jnp.dot(y, s_ref[...], preferred_element_type=f32)
        c = y - mu
        var = jnp.dot(c * c, s_ref[...], preferred_element_type=f32)
        yn = c * jax.lax.rsqrt(var + LN_EPS)
        return yn * g_ref[...] + be_ref[...]                     # (N, Cout*Lout)

    # ---- feature extractor: 2x (Conv1d -> ReLU -> LayerNorm(length)) ----
    a = x_ref[...]                                               # (N, C0*L0)
    a = conv_relu_ln(a, t0_ref, b0_ref, s0_ref, g0_ref, be0_ref)  # (N, C1*L1)
    a = conv_relu_ln(a, t1_ref, b1_ref, s1_ref, g1_ref, be1_ref)  # (N, FC_IN)

    # ---- fc_concat -> ReLU -> LayerNorm(hidden) ----
    h = jnp.dot(a, fcw_ref[...], preferred_element_type=f32) + fcb_ref[...]
    h = jnp.maximum(h, 0.0)
    mu = jnp.mean(h, axis=-1, keepdims=True)
    var = jnp.mean((h - mu) ** 2, axis=-1, keepdims=True)
    h = (h - mu) * jax.lax.rsqrt(var + LN_EPS)
    h = h * gfc_ref[...] + befc_ref[...]                         # (N, H)
    # note: nn.Dropout(0.4) is defined in __init__ but never used in forward.

    # ---- multi-head attention (merged Q/K projection) ----
    # TODO(synk): guessed GraphLearningMultiHeadAttention (see header note).
    qk = jnp.dot(h, wqk_ref[...], preferred_element_type=f32) + bqk_ref[...]
    scale = 1.0 / math.sqrt(D_K)
    score_sum = None
    for hd in range(N_HEAD):                                     # static unroll
        q_h = qk[:, hd * D_K:(hd + 1) * D_K]
        k_h = qk[:, HIDDEN_DIM + hd * D_K:HIDDEN_DIM + (hd + 1) * D_K]
        s = jnp.dot(q_h, k_h.T, preferred_element_type=f32) * scale   # (N, N)
        m = jnp.max(s, axis=-1, keepdims=True)
        e = jnp.exp(s - m)
        attn_ref[hd, :, :] = e / jnp.sum(e, axis=-1, keepdims=True)
        score_sum = s if score_sum is None else score_sum + s
    outputs = score_sum * (1.0 / N_HEAD)                         # (N, N) logits

    # ---- gumbel_trick: nn.Linear(1, 2), emitted lane-dense as (2, N, N) ----
    for j in range(2):
        out_ref[j, :, :] = outputs * gw_ref[j] + gb_ref[j]


# ------------------------------- wrapper --------------------------------------
def _vmem_spec():
    return pl.BlockSpec(memory_space=pltpu.MemorySpace.VMEM)


def _smem_spec():
    return pl.BlockSpec(memory_space=pltpu.MemorySpace.SMEM)


def _fused_forward(x_flat, p):
    n = NUM_NODES
    cost = pl.CostEstimate(flops=400_000,
                           transcendentals=N_HEAD * n * n,
                           bytes_accessed=200_000)
    return pl.pallas_call(
        _fused_kernel,
        out_shape=(
            jax.ShapeDtypeStruct((2, n, n), jnp.float32),        # gumbel (2, N, N)
            jax.ShapeDtypeStruct((N_HEAD, n, n), jnp.float32),   # attention matrix
        ),
        in_specs=[_vmem_spec() for _ in range(17)] + [_smem_spec(), _smem_spec()],
        out_specs=(_vmem_spec(), _vmem_spec()),
        cost_estimate=cost,
    )(x_flat,
      p["t0"], p["b0"], p["s0"], p["g0"], p["be0"],
      p["t1"], p["b1"], p["s1"], p["g1"], p["be1"],
      p["fc_w"], p["fc_b"], p["ln_fc_g"], p["ln_fc_b"],
      p["wqk"], p["bqk"],
      p["gw"], p["gb"])


@jax.jit
def attention_graph_learning_forward(x, params):
    """Mirrors Attention_Graph_Learning.forward; one fused Pallas kernel."""
    if x.ndim == 2:
        x = x.reshape(NUM_NODES, NODE_FEAS, -1)
    x_flat = x.reshape(NUM_NODES, -1).astype(jnp.float32)        # (N, C*L)
    out2, attn = _fused_forward(x_flat, params)
    outputs = jnp.transpose(out2, (1, 2, 0))                     # (N, N, 2)
    return outputs, attn


# ------------------------------- param prep -----------------------------------
def _conv_toeplitz(w, lin, stride):
    """Fold Conv1d weight (Cout, Cin, K) into T (Cin*Lin, Cout*Lout) so that
    y_flat[n, o*Lout + l] = sum_{c,t} w[o,c,t] * x_flat[n, c*Lin + stride*l + t]."""
    cout, cin, k = w.shape
    lout = (lin - k) // stride + 1
    t = np.zeros((cin * lin, cout * lout), np.float32)
    for o in range(cout):
        for c in range(cin):
            for l in range(lout):
                for tap in range(k):
                    t[c * lin + stride * l + tap, o * lout + l] = w[o, c, tap]
    return t


def _block_mean_matrix(cout, lout):
    """Block-diagonal (Cout*Lout, Cout*Lout) averaging matrix for LayerNorm(len)."""
    s = np.zeros((cout * lout, cout * lout), np.float32)
    for o in range(cout):
        s[o * lout:(o + 1) * lout, o * lout:(o + 1) * lout] = 1.0 / lout
    return s


def init_params(key):
    """init_weights: xavier_normal on Linear/Conv weights, biases filled with 0.1.
    Parameters are packed into the fused-kernel layout (Toeplitz conv, merged QK)."""
    ks = jax.random.split(key, 6)

    def xavier_normal(k, shape, fan_in, fan_out):
        std = math.sqrt(2.0 / (fan_in + fan_out))
        return (std * jax.random.normal(k, shape, dtype=jnp.float32))

    p = {}
    c_in, lin = NODE_FEAS, TOTAL_LEN
    for i, (c_out, ksz, st) in enumerate(zip(CONV_DIM, KERNEL_SIZE, STRIDE)):
        lout = OUT_SIZE[i]
        # PyTorch Conv1d weight (Cout, Cin, K); xavier fans = (Cin*K, Cout*K).
        w = np.asarray(xavier_normal(ks[i], (c_out, c_in, ksz), c_in * ksz, c_out * ksz))
        b = np.full((c_out,), 0.1, np.float32)
        p[f"t{i}"]  = jnp.asarray(_conv_toeplitz(w, lin, st))            # (Cin*Lin, Cout*Lout)
        p[f"b{i}"]  = jnp.asarray(np.repeat(b, lout)[None, :])           # (1, Cout*Lout)
        p[f"s{i}"]  = jnp.asarray(_block_mean_matrix(c_out, lout))       # LN averaging matrix
        # LayerNorm(Lout) affine (gamma=1, beta=0), tiled across channels.
        p[f"g{i}"]  = jnp.asarray(np.tile(np.ones(lout, np.float32), c_out)[None, :])
        p[f"be{i}"] = jnp.asarray(np.tile(np.zeros(lout, np.float32), c_out)[None, :])
        c_in, lin = c_out, lout

    # fc_concat: Linear(FC_IN, HIDDEN_DIM), stored pre-transposed (F, H).
    p["fc_w"] = xavier_normal(ks[2], (FC_IN, HIDDEN_DIM), FC_IN, HIDDEN_DIM)
    p["fc_b"] = jnp.full((1, HIDDEN_DIM), 0.1, jnp.float32)
    p["ln_fc_g"] = jnp.ones((1, HIDDEN_DIM), jnp.float32)
    p["ln_fc_b"] = jnp.zeros((1, HIDDEN_DIM), jnp.float32)

    # attention projections: Linear(H, n_head*d_k) for Q and K, merged (H, 2H).
    wq = xavier_normal(ks[3], (HIDDEN_DIM, N_HEAD * D_K), HIDDEN_DIM, N_HEAD * D_K)
    wk = xavier_normal(ks[4], (HIDDEN_DIM, N_HEAD * D_K), HIDDEN_DIM, N_HEAD * D_K)
    p["wqk"] = jnp.concatenate([wq, wk], axis=1)                         # (H, 2H)
    p["bqk"] = jnp.full((1, 2 * N_HEAD * D_K), 0.1, jnp.float32)

    # gumbel_trick: nn.Linear(1, 2) -> weight (2, 1) flattened, bias (2,)  (SMEM scalars)
    p["gw"] = xavier_normal(ks[5], (2, 1), 1, 2).reshape(2)
    p["gb"] = jnp.full((2,), 0.1, jnp.float32)
    return p


# ------------------------------- main ------------------------------------------
if __name__ == "__main__":
    key = jax.random.PRNGKey(0)
    k_x, k_p = jax.random.split(key)
    x = jax.random.normal(k_x, (NUM_NODES, NODE_FEAS, TOTAL_LEN), dtype=jnp.float32)
    params = init_params(k_p)

    outputs, attention = attention_graph_learning_forward(x, params)
    jax.block_until_ready((outputs, attention))

    assert outputs.shape == (NUM_NODES, NUM_NODES, 2)
    assert attention.shape == (N_HEAD, NUM_NODES, NUM_NODES)
    assert bool(jnp.all(jnp.isfinite(outputs))) and bool(jnp.all(jnp.isfinite(attention)))
    # attention rows are softmax-normalized
    assert bool(jnp.allclose(jnp.sum(attention, axis=-1), 1.0, atol=1e-4))
    print("KERNEL_OK")
</pallas_src>

<mosaic_0001>
module attributes {stable_mosaic.version = 11 : i64} {
  func.func @_fused_kernel(%arg0: memref<8x64xf32, #tpu.memory_space<vmem>>, %arg1: memref<64x112xf32, #tpu.memory_space<vmem>>, %arg2: memref<1x112xf32, #tpu.memory_space<vmem>>, %arg3: memref<112x112xf32, #tpu.memory_space<vmem>>, %arg4: memref<1x112xf32, #tpu.memory_space<vmem>>, %arg5: memref<1x112xf32, #tpu.memory_space<vmem>>, %arg6: memref<112x96xf32, #tpu.memory_space<vmem>>, %arg7: memref<1x96xf32, #tpu.memory_space<vmem>>, %arg8: memref<96x96xf32, #tpu.memory_space<vmem>>, %arg9: memref<1x96xf32, #tpu.memory_space<vmem>>, %arg10: memref<1x96xf32, #tpu.memory_space<vmem>>, %arg11: memref<96x32xf32, #tpu.memory_space<vmem>>, %arg12: memref<1x32xf32, #tpu.memory_space<vmem>>, %arg13: memref<1x32xf32, #tpu.memory_space<vmem>>, %arg14: memref<1x32xf32, #tpu.memory_space<vmem>>, %arg15: memref<32x64xf32, #tpu.memory_space<vmem>>, %arg16: memref<1x64xf32, #tpu.memory_space<vmem>>, %arg17: memref<2xf32, #tpu.memory_space<smem>>, %arg18: memref<2xf32, #tpu.memory_space<smem>>, %arg19: memref<2x8x8xf32, #tpu.memory_space<vmem>>, %arg20: memref<2x8x8xf32, #tpu.memory_space<vmem>>) attributes {dimension_semantics = [], scalar_prefetch = 0 : i64, scratch_operands = 0 : i64, tpu.core_type = #tpu.core_type<tc>} {
    %c0 = arith.constant 0 : index
    %c0_0 = arith.constant 0 : index
    %0 = vector.load %arg0[%c0, %c0_0] : memref<8x64xf32, #tpu.memory_space<vmem>>, vector<8x64xf32>
    %c0_1 = arith.constant 0 : index
    %c0_2 = arith.constant 0 : index
    %1 = vector.load %arg1[%c0_1, %c0_2] : memref<64x112xf32, #tpu.memory_space<vmem>>, vector<64x112xf32>
    %cst = arith.constant dense<0.000000e+00> : vector<8x112xf32>
    %2 = tpu.matmul %0, %1, %cst {dimension_numbers = #tpu.dot_dimension_numbers<[1], [0], [0], [1], [0, 0, 1, 1], [], []>} : vector<8x64xf32>, vector<64x112xf32>, vector<8x112xf32> -> vector<8x112xf32>
    %c0_3 = arith.constant 0 : index
    %c0_4 = arith.constant 0 : index
    %3 = vector.load %arg2[%c0_3, %c0_4] : memref<1x112xf32, #tpu.memory_space<vmem>>, vector<1x112xf32>
    %4 = vector.broadcast %3 : vector<1x112xf32> to vector<8x112xf32>
    %5 = arith.addf %2, %4 : vector<8x112xf32>
    %cst_5 = arith.constant 0.000000e+00 : f32
    %6 = vector.broadcast %cst_5 : f32 to vector<8x112xf32>
    %7 = arith.maximumf %5, %6 : vector<8x112xf32>
    %c0_6 = arith.constant 0 : index
    %c0_7 = arith.constant 0 : index
    %8 = vector.load %arg3[%c0_6, %c0_7] : memref<112x112xf32, #tpu.memory_space<vmem>>, vector<112x112xf32>
    %cst_8 = arith.constant dense<0.000000e+00> : vector<8x112xf32>
    %9 = tpu.matmul %7, %8, %cst_8 {dimension_numbers = #tpu.dot_dimension_numbers<[1], [0], [0], [1], [0, 0, 1, 1], [], []>} : vector<8x112xf32>, vector<112x112xf32>, vector<8x112xf32> -> vector<8x112xf32>
    %10 = arith.subf %7, %9 : vector<8x112xf32>
    %11 = arith.mulf %10, %10 : vector<8x112xf32>
    %c0_9 = arith.constant 0 : index
    %c0_10 = arith.constant 0 : index
    %12 = vector.load %arg3[%c0_9, %c0_10] : memref<112x112xf32, #tpu.memory_space<vmem>>, vector<112x112xf32>
    %cst_11 = arith.constant dense<0.000000e+00> : vector<8x112xf32>
    %13 = tpu.matmul %11, %12, %cst_11 {dimension_numbers = #tpu.dot_dimension_numbers<[1], [0], [0], [1], [0, 0, 1, 1], [], []>} : vector<8x112xf32>, vector<112x112xf32>, vector<8x112xf32> -> vector<8x112xf32>
    %cst_12 = arith.constant 9.99999974E-6 : f32
    %14 = vector.broadcast %cst_12 : f32 to vector<8x112xf32>
    %15 = arith.addf %13, %14 : vector<8x112xf32>
    %16 = math.rsqrt %15 : vector<8x112xf32>
    %17 = arith.mulf %10, %16 : vector<8x112xf32>
    %c0_13 = arith.constant 0 : index
    %c0_14 = arith.constant 0 : index
    %18 = vector.load %arg4[%c0_13, %c0_14] : memref<1x112xf32, #tpu.memory_space<vmem>>, vector<1x112xf32>
    %19 = vector.broadcast %18 : vector<1x112xf32> to vector<8x112xf32>
    %20 = arith.mulf %17, %19 : vector<8x112xf32>
    %c0_15 = arith.constant 0 : index
    %c0_16 = arith.constant 0 : index
    %21 = vector.load %arg5[%c0_15, %c0_16] : memref<1x112xf32, #tpu.memory_space<vmem>>, vector<1x112xf32>
    %22 = vector.broadcast %21 : vector<1x112xf32> to vector<8x112xf32>
    %23 = arith.addf %20, %22 : vector<8x112xf32>
    %c0_17 = arith.constant 0 : index
    %c0_18 = arith.constant 0 : index
    %24 = vector.load %arg6[%c0_17, %c0_18] : memref<112x96xf32, #tpu.memory_space<vmem>>, vector<112x96xf32>
    %cst_19 = arith.constant dense<0.000000e+00> : vector<8x96xf32>
    %25 = tpu.matmul %23, %24, %cst_19 {dimension_numbers = #tpu.dot_dimension_numbers<[1], [0], [0], [1], [0, 0, 1, 1], [], []>} : vector<8x112xf32>, vector<112x96xf32>, vector<8x96xf32> -> vector<8x96xf32>
    %c0_20 = arith.constant 0 : index
    %c0_21 = arith.constant 0 : index
    %26 = vector.load %arg7[%c0_20, %c0_21] : memref<1x96xf32, #tpu.memory_space<vmem>>, vector<1x96xf32>
    %27 = vector.broadcast %26 : vector<1x96xf32> to vector<8x96xf32>
    %28 = arith.addf %25, %27 : vector<8x96xf32>
    %cst_22 = arith.constant 0.000000e+00 : f32
    %29 = vector.broadcast %cst_22 : f32 to vector<8x96xf32>
    %30 = arith.maximumf %28, %29 : vector<8x96xf32>
    %c0_23 = arith.constant 0 : index
    %c0_24 = arith.constant 0 : index
    %31 = vector.load %arg8[%c0_23, %c0_24] : memref<96x96xf32, #tpu.memory_space<vmem>>, vector<96x96xf32>
    %cst_25 = arith.constant dense<0.000000e+00> : vector<8x96xf32>
    %32 = tpu.matmul %30, %31, %cst_25 {dimension_numbers = #tpu.dot_dimension_numbers<[1], [0], [0], [1], [0, 0, 1, 1], [], []>} : vector<8x96xf32>, vector<96x96xf32>, vector<8x96xf32> -> vector<8x96xf32>
    %33 = arith.subf %30, %32 : vector<8x96xf32>
    %34 = arith.mulf %33, %33 : vector<8x96xf32>
    %c0_26 = arith.constant 0 : index
    %c0_27 = arith.constant 0 : index
    %35 = vector.load %arg8[%c0_26, %c0_27] : memref<96x96xf32, #tpu.memory_space<vmem>>, vector<96x96xf32>
    %cst_28 = arith.constant dense<0.000000e+00> : vector<8x96xf32>
    %36 = tpu.matmul %34, %35, %cst_28 {dimension_numbers = #tpu.dot_dimension_numbers<[1], [0], [0], [1], [0, 0, 1, 1], [], []>} : vector<8x96xf32>, vector<96x96xf32>, vector<8x96xf32> -> vector<8x96xf32>
    %cst_29 = arith.constant 9.99999974E-6 : f32
    %37 = vector.broadcast %cst_29 : f32 to vector<8x96xf32>
    %38 = arith.addf %36, %37 : vector<8x96xf32>
    %39 = math.rsqrt %38 : vector<8x96xf32>
    %40 = arith.mulf %33, %39 : vector<8x96xf32>
    %c0_30 = arith.constant 0 : index
    %c0_31 = arith.constant 0 : index
    %41 = vector.load %arg9[%c0_30, %c0_31] : memref<1x96xf32, #tpu.memory_space<vmem>>, vector<1x96xf32>
    %42 = vector.broadcast %41 : vector<1x96xf32> to vector<8x96xf32>
    %43 = arith.mulf %40, %42 : vector<8x96xf32>
    %c0_32 = arith.constant 0 : index
    %c0_33 = arith.constant 0 : index
    %44 = vector.load %arg10[%c0_32, %c0_33] : memref<1x96xf32, #tpu.memory_space<vmem>>, vector<1x96xf32>
    %45 = vector.broadcast %44 : vector<1x96xf32> to vector<8x96xf32>
    %46 = arith.addf %43, %45 : vector<8x96xf32>
    %c0_34 = arith.constant 0 : index
    %c0_35 = arith.constant 0 : index
    %47 = vector.load %arg11[%c0_34, %c0_35] : memref<96x32xf32, #tpu.memory_space<vmem>>, vector<96x32xf32>
    %cst_36 = arith.constant dense<0.000000e+00> : vector<8x32xf32>
    %48 = tpu.matmul %46, %47, %cst_36 {dimension_numbers = #tpu.dot_dimension_numbers<[1], [0], [0], [1], [0, 0, 1, 1], [], []>} : vector<8x96xf32>, vector<96x32xf32>, vector<8x32xf32> -> vector<8x32xf32>
    %c0_37 = arith.constant 0 : index
    %c0_38 = arith.constant 0 : index
    %49 = vector.load %arg12[%c0_37, %c0_38] : memref<1x32xf32, #tpu.memory_space<vmem>>, vector<1x32xf32>
    %50 = vector.broadcast %49 : vector<1x32xf32> to vector<8x32xf32>
    %51 = arith.addf %48, %50 : vector<8x32xf32>
    %cst_39 = arith.constant 0.000000e+00 : f32
    %52 = vector.broadcast %cst_39 : f32 to vector<8x32xf32>
    %53 = arith.maximumf %51, %52 : vector<8x32xf32>
    %cst_40 = arith.constant dense<0.000000e+00> : vector<8xf32>
    %54 = vector.multi_reduction <add>, %53, %cst_40 [1] : vector<8x32xf32> to vector<8xf32>
    %55 = vector.shape_cast %54 : vector<8xf32> to vector<8x1xf32>
    %cst_41 = arith.constant 3.200000e+01 : f32
    %56 = vector.broadcast %cst_41 : f32 to vector<8x1xf32>
    %57 = arith.divf %55, %56 : vector<8x1xf32>
    %58 = vector.broadcast %57 : vector<8x1xf32> to vector<8x32xf32>
    %59 = arith.subf %53, %58 : vector<8x32xf32>
    %60 = arith.mulf %59, %59 : vector<8x32xf32>
    %cst_42 = arith.constant dense<0.000000e+00> : vector<8xf32>
    %61 = vector.multi_reduction <add>, %60, %cst_42 [1] : vector<8x32xf32> to vector<8xf32>
    %62 = vector.shape_cast %61 : vector<8xf32> to vector<8x1xf32>
    %cst_43 = arith.constant 3.200000e+01 : f32
    %63 = vector.broadcast %cst_43 : f32 to vector<8x1xf32>
    %64 = arith.divf %62, %63 : vector<8x1xf32>
    %65 = vector.broadcast %57 : vector<8x1xf32> to vector<8x32xf32>
    %66 = arith.subf %53, %65 : vector<8x32xf32>
    %cst_44 = arith.constant 9.99999974E-6 : f32
    %67 = vector.broadcast %cst_44 : f32 to vector<8x1xf32>
    %68 = arith.addf %64, %67 : vector<8x1xf32>
    %69 = math.rsqrt %68 : vector<8x1xf32>
    %70 = vector.broadcast %69 : vector<8x1xf32> to vector<8x32xf32>
    %71 = arith.mulf %66, %70 : vector<8x32xf32>
    %c0_45 = arith.constant 0 : index
    %c0_46 = arith.constant 0 : index
    %72 = vector.load %arg13[%c0_45, %c0_46] : memref<1x32xf32, #tpu.memory_space<vmem>>, vector<1x32xf32>
    %73 = vector.broadcast %72 : vector<1x32xf32> to vector<8x32xf32>
    %74 = arith.mulf %71, %73 : vector<8x32xf32>
    %c0_47 = arith.constant 0 : index
    %c0_48 = arith.constant 0 : index
    %75 = vector.load %arg14[%c0_47, %c0_48] : memref<1x32xf32, #tpu.memory_space<vmem>>, vector<1x32xf32>
    %76 = vector.broadcast %75 : vector<1x32xf32> to vector<8x32xf32>
    %77 = arith.addf %74, %76 : vector<8x32xf32>
    %c0_49 = arith.constant 0 : index
    %c0_50 = arith.constant 0 : index
    %78 = vector.load %arg15[%c0_49, %c0_50] : memref<32x64xf32, #tpu.memory_space<vmem>>, vector<32x64xf32>
    %cst_51 = arith.constant dense<0.000000e+00> : vector<8x64xf32>
    %79 = tpu.matmul %77, %78, %cst_51 {dimension_numbers = #tpu.dot_dimension_numbers<[1], [0], [0], [1], [0, 0, 1, 1], [], []>} : vector<8x32xf32>, vector<32x64xf32>, vector<8x64xf32> -> vector<8x64xf32>
    %c0_52 = arith.constant 0 : index
    %c0_53 = arith.constant 0 : index
    %80 = vector.load %arg16[%c0_52, %c0_53] : memref<1x64xf32, #tpu.memory_space<vmem>>, vector<1x64xf32>
    %81 = vector.broadcast %80 : vector<1x64xf32> to vector<8x64xf32>
    %82 = arith.addf %79, %81 : vector<8x64xf32>
    %83 = vector.extract_strided_slice %82 {offsets = [0, 0], sizes = [8, 16], strides = [1, 1]} : vector<8x64xf32> to vector<8x16xf32>
    %84 = vector.extract_strided_slice %82 {offsets = [0, 32], sizes = [8, 16], strides = [1, 1]} : vector<8x64xf32> to vector<8x16xf32>
    %85 = tpu.transpose %84, [1, 0] : vector<8x16xf32> -> vector<16x8xf32>
    %cst_54 = arith.constant dense<0.000000e+00> : vector<8x8xf32>
    %86 = tpu.matmul %83, %85, %cst_54 {dimension_numbers = #tpu.dot_dimension_numbers<[1], [0], [0], [1], [0, 0, 1, 1], [], []>} : vector<8x16xf32>, vector<16x8xf32>, vector<8x8xf32> -> vector<8x8xf32>
    %cst_55 = arith.constant 2.500000e-01 : f32
    %87 = vector.broadcast %cst_55 : f32 to vector<8x8xf32>
    %88 = arith.mulf %86, %87 : vector<8x8xf32>
    %cst_56 = arith.constant dense<0xFF800000> : vector<8xf32>
    %89 = vector.multi_reduction <maximumf>, %88, %cst_56 [1] : vector<8x8xf32> to vector<8xf32>
    %90 = vector.shape_cast %89 : vector<8xf32> to vector<8x1xf32>
    %91 = vector.broadcast %90 : vector<8x1xf32> to vector<8x8xf32>
    %92 = arith.subf %88, %91 : vector<8x8xf32>
    %93 = math.exp %92 : vector<8x8xf32>
    %cst_57 = arith.constant dense<0.000000e+00> : vector<8xf32>
    %94 = vector.multi_reduction <add>, %93, %cst_57 [1] : vector<8x8xf32> to vector<8xf32>
    %95 = vector.shape_cast %94 : vector<8xf32> to vector<8x1xf32>
    %96 = vector.broadcast %95 : vector<8x1xf32> to vector<8x8xf32>
    %97 = arith.divf %93, %96 : vector<8x8xf32>
    %c0_58 = arith.constant 0 : index
    %c0_59 = arith.constant 0 : index
    %c0_60 = arith.constant 0 : index
    %98 = vector.load %arg20[%c0_58, %c0_59, %c0_60] : memref<2x8x8xf32, #tpu.memory_space<vmem>>, vector<1x8x8xf32>
    %99 = vector.shape_cast %98 : vector<1x8x8xf32> to vector<8x8xf32>
    %100 = vector.shape_cast %97 : vector<8x8xf32> to vector<1x8x8xf32>
    tpu.vector_store %arg20[%c0_58, %c0_59, %c0_60], %100 {strides = array<i32>} : memref<2x8x8xf32, #tpu.memory_space<vmem>>, vector<1x8x8xf32>,
    %101 = vector.extract_strided_slice %82 {offsets = [0, 16], sizes = [8, 16], strides = [1, 1]} : vector<8x64xf32> to vector<8x16xf32>
    %102 = vector.extract_strided_slice %82 {offsets = [0, 48], sizes = [8, 16], strides = [1, 1]} : vector<8x64xf32> to vector<8x16xf32>
    %103 = tpu.transpose %102, [1, 0] : vector<8x16xf32> -> vector<16x8xf32>
    %cst_61 = arith.constant dense<0.000000e+00> : vector<8x8xf32>
    %104 = tpu.matmul %101, %103, %cst_61 {dimension_numbers = #tpu.dot_dimension_numbers<[1], [0], [0], [1], [0, 0, 1, 1], [], []>} : vector<8x16xf32>, vector<16x8xf32>, vector<8x8xf32> -> vector<8x8xf32>
    %cst_62 = arith.constant 2.500000e-01 : f32
    %105 = vector.broadcast %cst_62 : f32 to vector<8x8xf32>
    %106 = arith.mulf %104, %105 : vector<8x8xf32>
    %cst_63 = arith.constant dense<0xFF800000> : vector<8xf32>
    %107 = vector.multi_reduction <maximumf>, %106, %cst_63 [1] : vector<8x8xf32> to vector<8xf32>
    %108 = vector.shape_cast %107 : vector<8xf32> to vector<8x1xf32>
    %109 = vector.broadcast %108 : vector<8x1xf32> to vector<8x8xf32>
    %110 = arith.subf %106, %109 : vector<8x8xf32>
    %111 = math.exp %110 : vector<8x8xf32>
    %cst_64 = arith.constant dense<0.000000e+00> : vector<8xf32>
    %112 = vector.multi_reduction <add>, %111, %cst_64 [1] : vector<8x8xf32> to vector<8xf32>
    %113 = vector.shape_cast %112 : vector<8xf32> to vector<8x1xf32>
    %114 = vector.broadcast %113 : vector<8x1xf32> to vector<8x8xf32>
    %115 = arith.divf %111, %114 : vector<8x8xf32>
    %c1 = arith.constant 1 : index
    %c0_65 = arith.constant 0 : index
    %c0_66 = arith.constant 0 : index
    %116 = vector.load %arg20[%c1, %c0_65, %c0_66] : memref<2x8x8xf32, #tpu.memory_space<vmem>>, vector<1x8x8xf32>
    %117 = vector.shape_cast %116 : vector<1x8x8xf32> to vector<8x8xf32>
    %118 = vector.shape_cast %115 : vector<8x8xf32> to vector<1x8x8xf32>
    tpu.vector_store %arg20[%c1, %c0_65, %c0_66], %118 {strides = array<i32>} : memref<2x8x8xf32, #tpu.memory_space<vmem>>, vector<1x8x8xf32>,
    %119 = arith.addf %88, %106 : vector<8x8xf32>
    %cst_67 = arith.constant 5.000000e-01 : f32
    %120 = vector.broadcast %cst_67 : f32 to vector<8x8xf32>
    %121 = arith.mulf %119, %120 : vector<8x8xf32>
    %c0_68 = arith.constant 0 : index
    %122 = memref.load %arg17[%c0_68] : memref<2xf32, #tpu.memory_space<smem>>
    %123 = vector.broadcast %122 : f32 to vector<8x8xf32>
    %124 = arith.mulf %121, %123 : vector<8x8xf32>
    %c0_69 = arith.constant 0 : index
    %125 = memref.load %arg18[%c0_69] : memref<2xf32, #tpu.memory_space<smem>>
    %126 = vector.broadcast %125 : f32 to vector<8x8xf32>
    %127 = arith.addf %124, %126 : vector<8x8xf32>
    %c0_70 = arith.constant 0 : index
    %c0_71 = arith.constant 0 : index
    %c0_72 = arith.constant 0 : index
    %128 = vector.load %arg19[%c0_70, %c0_71, %c0_72] : memref<2x8x8xf32, #tpu.memory_space<vmem>>, vector<1x8x8xf32>
    %129 = vector.shape_cast %128 : vector<1x8x8xf32> to vector<8x8xf32>
    %130 = vector.shape_cast %127 : vector<8x8xf32> to vector<1x8x8xf32>
    tpu.vector_store %arg19[%c0_70, %c0_71, %c0_72], %130 {strides = array<i32>} : memref<2x8x8xf32, #tpu.memory_space<vmem>>, vector<1x8x8xf32>,
    %c1_73 = arith.constant 1 : index
    %131 = memref.load %arg17[%c1_73] : memref<2xf32, #tpu.memory_space<smem>>
    %132 = vector.broadcast %131 : f32 to vector<8x8xf32>
    %133 = arith.mulf %121, %132 : vector<8x8xf32>
    %c1_74 = arith.constant 1 : index
    %134 = memref.load %arg18[%c1_74] : memref<2xf32, #tpu.memory_space<smem>>
    %135 = vector.broadcast %134 : f32 to vector<8x8xf32>
    %136 = arith.addf %133, %135 : vector<8x8xf32>
    %c1_75 = arith.constant 1 : index
    %c0_76 = arith.constant 0 : index
    %c0_77 = arith.constant 0 : index
    %137 = vector.load %arg19[%c1_75, %c0_76, %c0_77] : memref<2x8x8xf32, #tpu.memory_space<vmem>>, vector<1x8x8xf32>
    %138 = vector.shape_cast %137 : vector<1x8x8xf32> to vector<8x8xf32>
    %139 = vector.shape_cast %136 : vector<8x8xf32> to vector<1x8x8xf32>
    tpu.vector_store %arg19[%c1_75, %c0_76, %c0_77], %139 {strides = array<i32>} : memref<2x8x8xf32, #tpu.memory_space<vmem>>, vector<1x8x8xf32>,
    return
  }
}

</mosaic_0001>

<llo_original>
// kernel: attention_graph_learning_forward.1
$region0: #{attention_graph_learning_forward.1}
  #allocation0 [shape = 'u32[]', space=smem, size = 0x4, offset = 0x4, fixed_abs, tag = 'smem constant byte address 0x4 - core index']
  #allocation1 [shape = 'u32[144,128]{1,0:T(1,128)}', space=vmem, size = 0x12000, scoped, tag = 'internal scratch']
  %s0 = inlined_call_operand.vmem [shape: f32[8,64], index: 0, kind: input, shape index: {}]
  %s1 = inlined_call_operand.vmem [shape: f32[64,112], index: 1, kind: input, shape index: {}]
  %s2 = inlined_call_operand.vmem [shape: f32[1,112], index: 2, kind: input, shape index: {}]
  %s3 = inlined_call_operand.vmem [shape: f32[112,112], index: 3, kind: input, shape index: {}]
  %s4 = inlined_call_operand.vmem [shape: f32[1,112], index: 4, kind: input, shape index: {}]
  %s5 = inlined_call_operand.vmem [shape: f32[1,112], index: 5, kind: input, shape index: {}]
  %s6 = inlined_call_operand.vmem [shape: f32[112,96], index: 6, kind: input, shape index: {}]
  %s7 = inlined_call_operand.vmem [shape: f32[1,96], index: 7, kind: input, shape index: {}]
  %s8 = inlined_call_operand.vmem [shape: f32[96,96], index: 8, kind: input, shape index: {}]
  %s9 = inlined_call_operand.vmem [shape: f32[1,96], index: 9, kind: input, shape index: {}]
  %s10 = inlined_call_operand.vmem [shape: f32[1,96], index: 10, kind: input, shape index: {}]
  %s11 = inlined_call_operand.vmem [shape: f32[96,32], index: 11, kind: input, shape index: {}]
  %s12 = inlined_call_operand.hbm [shape: f32[1,32], index: 12, kind: input, shape index: {}]
  %s13 = inlined_call_operand.vmem [shape: f32[1,32], index: 13, kind: input, shape index: {}]
  %s14 = inlined_call_operand.vmem [shape: f32[1,32], index: 14, kind: input, shape index: {}]
  %s15 = inlined_call_operand.vmem [shape: f32[32,64], index: 15, kind: input, shape index: {}]
  %s16 = inlined_call_operand.hbm [shape: f32[1,64], index: 16, kind: input, shape index: {}]
  %s17 = inlined_call_operand.vmem [shape: f32[2], index: 17, kind: input, shape index: {}]
  %s18 = inlined_call_operand.vmem [shape: f32[2], index: 18, kind: input, shape index: {}]
  %s19 = inlined_call_operand.vmem [shape: f32[2,8,8], index: 19, kind: output, shape index: {0}]
  %s20 = inlined_call_operand.hbm [shape: f32[2,8,8], index: 20, kind: output, shape index: {1}]
  %21 = xla_tuple %s19, %s20
  %s22 = sld [smem:[#allocation0]]
  $region110: #{attention_graph_learning_forward.1} parent=0
    _
  %s24 = ssub.s32 1, %s22
  %s25 = scalar_select 0, %s24, %s22
  $region1: #{attention_graph_learning_forward.1} parent=0
    #allocation2 [shape = 'u8[512]{0}', space=vmem, size = 0x400, scoped, tag = 'input window, operand 12, single buffered']
    #allocation3 [shape = 's32[1]{0}', space=sflag, size = 0x4, scoped, tag = 'scoped memory for attention_graph_learning_forward.1']
    #allocation4 [shape = 's32[1]{0}', space=sflag, size = 0x4, scoped, tag = 'scoped memory for attention_graph_learning_forward.1']
    #allocation5 [shape = 's32[1]{0}', space=sflag, size = 0x4, scoped, tag = 'scoped memory for attention_graph_learning_forward.1']
    #allocation6 [shape = 'u8[512]{0}', space=vmem, size = 0x400, scoped, tag = 'input window, operand 16, single buffered']
    #allocation7 [shape = 's32[1]{0}', space=sflag, size = 0x4, scoped, tag = 'scoped memory for attention_graph_learning_forward.1']
    #allocation8 [shape = 'u8[512]{0}', space=smem, size = 0x200, scoped, tag = 'input window, operand 17, single buffered']
    #allocation9 [shape = 'u8[512]{0}', space=smem, size = 0x200, scoped, tag = 'input window, operand 18, single buffered']
    #allocation10 [shape = 's32[1]{0}', space=sflag, size = 0x4, scoped, tag = 'scoped memory for attention_graph_learning_forward.1']
    #allocation11 [shape = 'u8[8192]{0}', space=vmem, size = 0x2000, scoped, tag = 'output window, operand 1, single buffered']
    %26 = vsyncpa [#allocation3], 0
    %27 = vsyncpa [#allocation7], 0
    %28 = vsyncpa [#allocation5], 0
    %29 = vsyncpa [#allocation10], 0
    %30 = vsyncpa [#allocation4], 0
    // Predicated region
    $region2: #{attention_graph_learning_forward.1} parent=1 // pred_check
      _
    $region3: #{attention_graph_learning_forward.1} parent=1 // pred_check_branch
      %32 = sbr.rel (0) target = $region5
    $region4: #{attention_graph_learning_forward.1} parent=1 // pred_region
      _
    $region5: #{attention_graph_learning_forward.1} parent=1 // pred_fallthru
      _
    // Predicated region
    $region6: #{attention_graph_learning_forward.1} parent=1 // pred_check
      _
    $region7: #{attention_graph_learning_forward.1} parent=1 // pred_check_branch
      %34 = sbr.rel (0) target = $region9
    $region8: #{attention_graph_learning_forward.1} parent=1 // pred_region
      _
    $region9: #{attention_graph_learning_forward.1} parent=1 // pred_fallthru
      _
    // Predicated region
    $region10: #{attention_graph_learning_forward.1} parent=1 // pred_check
      _
    $region11: #{attention_graph_learning_forward.1} parent=1 // pred_check_branch
      %36 = sbr.rel (0) target = $region13
    $region12: #{attention_graph_learning_forward.1} parent=1 // pred_region
      _
    $region13: #{attention_graph_learning_forward.1} parent=1 // pred_fallthru
      _
    // Predicated region
    $region14: #{attention_graph_learning_forward.1} parent=1 // pred_check
      _
    $region15: #{attention_graph_learning_forward.1} parent=1 // pred_check_branch
      %38 = sbr.rel (0) target = $region17
    $region16: #{attention_graph_learning_forward.1} parent=1 // pred_region
      _
    $region17: #{attention_graph_learning_forward.1} parent=1 // pred_fallthru
      _
    // Predicated region
    $region18: #{attention_graph_learning_forward.1} parent=1 // pred_check
      _
    $region19: #{attention_graph_learning_forward.1} parent=1 // pred_check_branch
      %40 = sbr.rel (0) target = $region21
    $region20: #{attention_graph_learning_forward.1} parent=1 // pred_region
      _
    $region21: #{attention_graph_learning_forward.1} parent=1 // pred_fallthru
      _
    // Predicated region
    $region22: #{attention_graph_learning_forward.1} parent=1 // pred_check
      _
    $region23: #{attention_graph_learning_forward.1} parent=1 // pred_check_branch
      %42 = sbr.rel (0) target = $region25
    $region24: #{attention_graph_learning_forward.1} parent=1 // pred_region
      _
    $region25: #{attention_graph_learning_forward.1} parent=1 // pred_fallthru
      _
    // Predicated region
    $region26: #{attention_graph_learning_forward.1} parent=1 // pred_check
      _
    $region27: #{attention_graph_learning_forward.1} parent=1 // pred_check_branch
      %44 = sbr.rel (0) target = $region29
    $region28: #{attention_graph_learning_forward.1} parent=1 // pred_region
      _
    $region29: #{attention_graph_learning_forward.1} parent=1 // pred_fallthru
      _
    // Predicated region
    $region30: #{attention_graph_learning_forward.1} parent=1 // pred_check
      _
    $region31: #{attention_graph_learning_forward.1} parent=1 // pred_check_branch
      %46 = sbr.rel (0) target = $region33
    $region32: #{attention_graph_learning_forward.1} parent=1 // pred_region
      _
    $region33: #{attention_graph_learning_forward.1} parent=1 // pred_fallthru
      _
    // Predicated region
    $region34: #{attention_graph_learning_forward.1} parent=1 // pred_check
      _
    $region35: #{attention_graph_learning_forward.1} parent=1 // pred_check_branch
      %48 = sbr.rel (0) target = $region37
    $region36: #{attention_graph_learning_forward.1} parent=1 // pred_region
      _
    $region37: #{attention_graph_learning_forward.1} parent=1 // pred_fallthru
      _
    // Predicated region
    $region38: #{attention_graph_learning_forward.1} parent=1 // pred_check
      _
    $region39: #{attention_graph_learning_forward.1} parent=1 // pred_check_branch
      %50 = sbr.rel (0) target = $region41
    $region40: #{attention_graph_learning_forward.1} parent=1 // pred_region
      _
    $region41: #{attention_graph_learning_forward.1} parent=1 // pred_fallthru
      _
    // Predicated region
    $region42: #{attention_graph_learning_forward.1} parent=1 // pred_check
      _
    $region43: #{attention_graph_learning_forward.1} parent=1 // pred_check_branch
      %52 = sbr.rel (0) target = $region45
    $region44: #{attention_graph_learning_forward.1} parent=1 // pred_region
      _
    $region45: #{attention_graph_learning_forward.1} parent=1 // pred_fallthru
      _
    // Predicated region
    $region46: #{attention_graph_learning_forward.1} parent=1 // pred_check
      _
    $region47: #{attention_graph_learning_forward.1} parent=1 // pred_check_branch
      %54 = sbr.rel (0) target = $region49
    $region48: #{attention_graph_learning_forward.1} parent=1 // pred_region
      _
    $region49: #{attention_graph_learning_forward.1} parent=1 // pred_fallthru
      _
    // Predicated region
    $region50: #{attention_graph_learning_forward.1} parent=1 // pred_check
      _
    $region51: #{attention_graph_learning_forward.1} parent=1 // pred_check_branch
      %56 = sbr.rel (0) target = $region53
    $region52: #{attention_graph_learning_forward.1} parent=1 // pred_region
      %s58 = ssub.s32 16, 16
      %59 = vsyncadd [#allocation3], %s58
      %s61 = sshll.u32 [#allocation2], 4
      %s62 = int_to_ptr.vmem [resolvable:$true] %s61
      %64 = dma.hbm_to_vmem [thread:$0]  %s12, 16, %s62, [#allocation3]
    $region53: #{attention_graph_learning_forward.1} parent=1 // pred_fallthru
      _
    // Predicated region
    $region54: #{attention_graph_learning_forward.1} parent=1 // pred_check
      _
    $region55: #{attention_graph_learning_forward.1} parent=1 // pred_check_branch
      %66 = sbr.rel (0) target = $region57
    $region56: #{attention_graph_learning_forward.1} parent=1 // pred_region
      _
    $region57: #{attention_graph_learning_forward.1} parent=1 // pred_fallthru
      _
    // Predicated region
    $region58: #{attention_graph_learning_forward.1} parent=1 // pred_check
      _
    $region59: #{attention_graph_learning_forward.1} parent=1 // pred_check_branch
      %68 = sbr.rel (0) target = $region61
    $region60: #{attention_graph_learning_forward.1} parent=1 // pred_region
      _
    $region61: #{attention_graph_learning_forward.1} parent=1 // pred_fallthru
      _
    // Predicated region
    $region62: #{attention_graph_learning_forward.1} parent=1 // pred_check
      _
    $region63: #{attention_graph_learning_forward.1} parent=1 // pred_check_branch
      %70 = sbr.rel (0) target = $region65
    $region64: #{attention_graph_learning_forward.1} parent=1 // pred_region
      _
    $region65: #{attention_graph_learning_forward.1} parent=1 // pred_fallthru
      _
    // Predicated region
    $region66: #{attention_graph_learning_forward.1} parent=1 // pred_check
      _
    $region67: #{attention_graph_learning_forward.1} parent=1 // pred_check_branch
      %72 = sbr.rel (0) target = $region69
    $region68: #{attention_graph_learning_forward.1} parent=1 // pred_region
      %s74 = ssub.s32 16, 16
      %75 = vsyncadd [#allocation7], %s74
      %s77 = sshll.u32 [#allocation6], 4
      %s78 = int_to_ptr.vmem [resolvable:$true] %s77
      %80 = dma.hbm_to_vmem [thread:$0]  %s16, 16, %s78, [#allocation7]
    $region69: #{attention_graph_learning_forward.1} parent=1 // pred_fallthru
      _
    // Predicated region
    $region70: #{attention_graph_learning_forward.1} parent=1 // pred_check
      _
    $region71: #{attention_graph_learning_forward.1} parent=1 // pred_check_branch
      %82 = sbr.rel (0) target = $region73
    $region72: #{attention_graph_learning_forward.1} parent=1 // pred_region
      %s84 = ssub.s32 16, 16
      %85 = vsyncadd [#allocation5], %s84
      %s87 = sshll.u32 %s17, 4
      %s88 = int_to_ptr.vmem [resolvable:$true] %s87
      %90 = dma.vmem_to_smem %s88, 16, [#allocation8], [#allocation5]
    $region73: #{attention_graph_learning_forward.1} parent=1 // pred_fallthru
      _
    // Predicated region
    $region74: #{attention_graph_learning_forward.1} parent=1 // pred_check
      _
    $region75: #{attention_graph_learning_forward.1} parent=1 // pred_check_branch
      %92 = sbr.rel (0) target = $region77
    $region76: #{attention_graph_learning_forward.1} parent=1 // pred_region
      %s94 = ssub.s32 16, 16
      %95 = vsyncadd [#allocation10], %s94
      %s97 = sshll.u32 %s18, 4
      %s98 = int_to_ptr.vmem [resolvable:$true] %s97
      %100 = dma.vmem_to_smem %s98, 16, [#allocation9], [#allocation10]
    $region77: #{attention_graph_learning_forward.1} parent=1 // pred_fallthru
      _
    // Predicated region
    $region78: #{attention_graph_learning_forward.1} parent=1 // pred_check
      _
    $region79: #{attention_graph_learning_forward.1} parent=1 // pred_check_branch
      %102 = sbr.rel (0) target = $region81
    $region80: #{attention_graph_learning_forward.1} parent=1 // pred_region
      %103 = dma.done [#allocation3], 16
    $region81: #{attention_graph_learning_forward.1} parent=1 // pred_fallthru
      _
    // Predicated region
    $region82: #{attention_graph_learning_forward.1} parent=1 // pred_check
      _
    $region83: #{attention_graph_learning_forward.1} parent=1 // pred_check_branch
      %105 = sbr.rel (0) target = $region85
    $region84: #{attention_graph_learning_forward.1} parent=1 // pred_region
      %106 = dma.done [#allocation7], 16
    $region85: #{attention_graph_learning_forward.1} parent=1 // pred_fallthru
      _
    // Predicated region
    $region86: #{attention_graph_learning_forward.1} parent=1 // pred_check
      _
    $region87: #{attention_graph_learning_forward.1} parent=1 // pred_check_branch
      %108 = sbr.rel (0) target = $region89
    $region88: #{attention_graph_learning_forward.1} parent=1 // pred_region
      %109 = dma.done [#allocation5], 16
    $region89: #{attention_graph_learning_forward.1} parent=1 // pred_fallthru
      _
    // Predicated region
    $region90: #{attention_graph_learning_forward.1} parent=1 // pred_check
      _
    $region91: #{attention_graph_learning_forward.1} parent=1 // pred_check_branch
      %111 = sbr.rel (0) target = $region93
    $region92: #{attention_graph_learning_forward.1} parent=1 // pred_region
      %112 = dma.done [#allocation10], 16
    $region93: #{attention_graph_learning_forward.1} parent=1 // pred_fallthru
      _
    %113 = sfence
    %v114 = vld [vmem:[%s0] sm:$0xff]
    %v115 = vld [vmem:[%s1] sm:$0xff]
    %v116 = vld [vmem:[%s1 + $0x8] sm:$0xff]
    %v117 = vld [vmem:[%s1 + $0x10] sm:$0xff]
    %v118 = vld [vmem:[%s1 + $0x18] sm:$0xff]
    %v119 = vld [vmem:[%s1 + $0x20] sm:$0xff]
    %v120 = vld [vmem:[%s1 + $0x28] sm:$0xff]
    %v121 = vld [vmem:[%s1 + $0x30] sm:$0xff]
    %v122 = vld [vmem:[%s1 + $0x38] sm:$0xff]
    %v123 = vld [vmem:[%s2] sm:$0x1]
    %v125 = vlaneseq
    %v126 = vshrl.u32 %v125, 7
    %v127 = vsub.s32 0, %v126
    %v128 = vrot.slane %v123, %v127
    %vm130 = vcmask 523264
    %v132 = vsel %vm130, %v114, 0
    %134 = vmatprep.subr.mxu0 0.0
    %135 = vmatpush1.msra.mxu0 %v115
    %136 = vmatprep.subr.mxu0 0.0
    %137 = vmatpush1.msra.mxu0 %v116
    %138 = vmatprep.subr.mxu0 0.0
    %139 = vmatpush1.msra.mxu0 %v117
    %140 = vmatprep.subr.mxu0 0.0
    %141 = vmatpush1.msra.mxu0 %v118
    %142 = vmatprep.subr.mxu0 0.0
    %143 = vmatpush1.msra.mxu0 %v119
    %144 = vmatprep.subr.mxu0 0.0
    %145 = vmatpush1.msra.mxu0 %v120
    %146 = vmatprep.subr.mxu0 0.0
    %147 = vmatpush1.msra.mxu0 %v121
    %148 = vmatprep.subr.mxu0 0.0
    %149 = vmatpush1.msra.mxu0 %v122
    %150 = vmatprep.subr.mxu0 0.0
    %151 = vmatpush1.msra.mxu0 0.0
    %152 = vmatprep.subr.mxu0 0.0
    %153 = vmatpush1.msra.mxu0 0.0
    %154 = vmatprep.subr.mxu0 0.0
    %155 = vmatpush1.msra.mxu0 0.0
    %156 = vmatprep.subr.mxu0 0.0
    %157 = vmatpush1.msra.mxu0 0.0
    %158 = vmatprep.subr.mxu0 0.0
    %159 = vmatpush1.msra.mxu0 0.0
    %160 = vmatprep.subr.mxu0 0.0
    %161 = vmatpush1.msra.mxu0 0.0
    %162 = vmatprep.subr.mxu0 0.0
    %163 = vmatpush1.msra.mxu0 0.0
    %164 = vmatprep.subr.mxu0 0.0
    %165 = vmatpush1.msra.mxu0 0.0
    %166 = vmatprep.subr.mxu0 0.0
    %167 = vmatpush1.msra.mxu0 0.0
    %168 = vmatprep.subr.mxu0 0.0
    %169 = vmatpush1.msra.mxu0 0.0
    %170 = vmatprep.subr.mxu0 0.0
    %171 = vmatpush1.msra.mxu0 0.0
    %172 = vmatprep.subr.mxu0 0.0
    %173 = vmatpush1.msra.mxu0 0.0
    %174 = vmatprep.subr.mxu0 0.0
    %175 = vmatpush1.msra.mxu0 0.0
    %176 = vmatprep.subr.mxu0 0.0
    %177 = vmatpush1.msra.mxu0 0.0
    %178 = vmatprep.subr.mxu0 0.0
    %179 = vmatpush1.msra.mxu0 0.0
    %180 = vmatprep.subr.mxu0 0.0
    %181 = vmatpush1.msra.mxu0 0.0
    %182 = vmatprep.subr.mxu0 0.0
    %183 = vmatpush1.msra.mxu0 0.0
    %184 = vmatprep.subr.mxu0 0.0
    %185 = vmatpush1.msra.mxu0 0.0
    %186 = vmatprep.subr.mxu0 0.0
    %187 = vmatpush1.msra.mxu0 0.0
    %188 = vmatprep.subr.mxu0 0.0
    %189 = vmatpush1.msra.mxu0 0.0
    %190 = vmatprep.subr.mxu0 0.0
    %191 = vmatpush1.msra.mxu0 0.0
    %192 = vmatprep.subr.mxu0 0.0
    %193 = vmatpush1.msra.mxu0 0.0
    %194 = vmatprep.subr.mxu0 0.0
    %195 = vmatpush1.msra.mxu0 0.0
    %196 = vmatprep.subr.mxu0 0.0
    %197 = vmatpush1.msra.mxu0 0.0
    %198 = vmatprep.mubr.f32.mxu0 0.0
    %199 = vmatmul.mubr.f32.gmra.mrb[0].mxu0 %v132
    %v200 = vpop.f32.mrb[0].mxu0
    %v201 = vadd.f32 %v128, %v200
    %v202 = vpop.f32.mrb[0].mxu0
    %203 = vdwg.mxu0
    %v204 = vmax.f32 %v201, 0.0
    %v205 = vld [vmem:[%s3] sm:$0xff]
    %v206 = vld [vmem:[%s3 + $0x8] sm:$0xff]
    %v207 = vld [vmem:[%s3 + $0x10] sm:$0xff]
    %v208 = vld [vmem:[%s3 + $0x18] sm:$0xff]
    %v209 = vld [vmem:[%s3 + $0x20] sm:$0xff]
    %v210 = vld [vmem:[%s3 + $0x28] sm:$0xff]
    %v211 = vld [vmem:[%s3 + $0x30] sm:$0xff]
    %v212 = vld [vmem:[%s3 + $0x38] sm:$0xff]
    %v213 = vld [vmem:[%s3 + $0x40] sm:$0xff]
    %v214 = vld [vmem:[%s3 + $0x48] sm:$0xff]
    %v215 = vld [vmem:[%s3 + $0x50] sm:$0xff]
    %v216 = vld [vmem:[%s3 + $0x58] sm:$0xff]
    %v217 = vld [vmem:[%s3 + $0x60] sm:$0xff]
    %v218 = vld [vmem:[%s3 + $0x68] sm:$0xff]
    %vm219 = vcmask 916480
    %v221 = vsel %vm219, %v204, 0
    %223 = vmatprep.subr.mxu0 0.0
    %224 = vmatpush1.msra.mxu0 %v205
    %225 = vmatprep.subr.mxu0 0.0
    %226 = vmatpush1.msra.mxu0 %v206
    %227 = vmatprep.subr.mxu0 0.0
    %228 = vmatpush1.msra.mxu0 %v207
    %229 = vmatprep.subr.mxu0 0.0
    %230 = vmatpush1.msra.mxu0 %v208
    %231 = vmatprep.subr.mxu0 0.0
    %232 = vmatpush1.msra.mxu0 %v209
    %233 = vmatprep.subr.mxu0 0.0
    %234 = vmatpush1.msra.mxu0 %v210
    %235 = vmatprep.subr.mxu0 0.0
    %236 = vmatpush1.msra.mxu0 %v211
    %237 = vmatprep.subr.mxu0 0.0
    %238 = vmatpush1.msra.mxu0 %v212
    %239 = vmatprep.subr.mxu0 0.0
    %240 = vmatpush1.msra.mxu0 %v213
    %241 = vmatprep.subr.mxu0 0.0
    %242 = vmatpush1.msra.mxu0 %v214
    %243 = vmatprep.subr.mxu0 0.0
    %244 = vmatpush1.msra.mxu0 %v215
    %245 = vmatprep.subr.mxu0 0.0
    %246 = vmatpush1.msra.mxu0 %v216
    %247 = vmatprep.subr.mxu0 0.0
    %248 = vmatpush1.msra.mxu0 %v217
    %249 = vmatprep.subr.mxu0 0.0
    %250 = vmatpush1.msra.mxu0 %v218
    %251 = vmatprep.subr.mxu0 0.0
    %252 = vmatpush1.msra.mxu0 0.0
    %253 = vmatprep.subr.mxu0 0.0
    %254 = vmatpush1.msra.mxu0 0.0
    %255 = vmatprep.subr.mxu0 0.0
    %256 = vmatpush1.msra.mxu0 0.0
    %257 = vmatprep.subr.mxu0 0.0
    %258 = vmatpush1.msra.mxu0 0.0
    %259 = vmatprep.subr.mxu0 0.0
    %260 = vmatpush1.msra.mxu0 0.0
    %261 = vmatprep.subr.mxu0 0.0
    %262 = vmatpush1.msra.mxu0 0.0
    %263 = vmatprep.subr.mxu0 0.0
    %264 = vmatpush1.msra.mxu0 0.0
    %265 = vmatprep.subr.mxu0 0.0
    %266 = vmatpush1.msra.mxu0 0.0
    %267 = vmatprep.subr.mxu0 0.0
    %268 = vmatpush1.msra.mxu0 0.0
    %269 = vmatprep.subr.mxu0 0.0
    %270 = vmatpush1.msra.mxu0 0.0
    %271 = vmatprep.subr.mxu0 0.0
    %272 = vmatpush1.msra.mxu0 0.0
    %273 = vmatprep.subr.mxu0 0.0
    %274 = vmatpush1.msra.mxu0 0.0
    %275 = vmatprep.subr.mxu0 0.0
    %276 = vmatpush1.msra.mxu0 0.0
    %277 = vmatprep.subr.mxu0 0.0
    %278 = vmatpush1.msra.mxu0 0.0
    %279 = vmatprep.subr.mxu0 0.0
    %280 = vmatpush1.msra.mxu0 0.0
    %281 = vmatprep.subr.mxu0 0.0
    %282 = vmatpush1.msra.mxu0 0.0
    %283 = vmatprep.subr.mxu0 0.0
    %284 = vmatpush1.msra.mxu0 0.0
    %285 = vmatprep.subr.mxu0 0.0
    %286 = vmatpush1.msra.mxu0 0.0
    %287 = vmatprep.mubr.f32.mxu0 0.0
    %288 = vmatmul.mubr.f32.gmra.mrb[0].mxu0 %v221
    %v289 = vpop.f32.mrb[0].mxu0
    %v290 = vadd.f32 0.0, %v289
    %v291 = vpop.f32.mrb[0].mxu0
    %292 = vdwg.mxu0
    %v293 = vsub.f32 %v204, %v290
    %v294 = vmul.f32 %v293, %v293
    %v296 = vsel %vm219, %v294, 0
    %298 = vmatprep.subr.mxu0 0.0
    %299 = vmatpush1.msra.mxu0 %v205
    %300 = vmatprep.subr.mxu0 0.0
    %301 = vmatpush1.msra.mxu0 %v206
    %302 = vmatprep.subr.mxu0 0.0
    %303 = vmatpush1.msra.mxu0 %v207
    %304 = vmatprep.subr.mxu0 0.0
    %305 = vmatpush1.msra.mxu0 %v208
    %306 = vmatprep.subr.mxu0 0.0
    %307 = vmatpush1.msra.mxu0 %v209
    %308 = vmatprep.subr.mxu0 0.0
    %309 = vmatpush1.msra.mxu0 %v210
    %310 = vmatprep.subr.mxu0 0.0
    %311 = vmatpush1.msra.mxu0 %v211
    %312 = vmatprep.subr.mxu0 0.0
    %313 = vmatpush1.msra.mxu0 %v212
    %314 = vmatprep.subr.mxu0 0.0
    %315 = vmatpush1.msra.mxu0 %v213
    %316 = vmatprep.subr.mxu0 0.0
    %317 = vmatpush1.msra.mxu0 %v214
    %318 = vmatprep.subr.mxu0 0.0
    %319 = vmatpush1.msra.mxu0 %v215
    %320 = vmatprep.subr.mxu0 0.0
    %321 = vmatpush1.msra.mxu0 %v216
    %322 = vmatprep.subr.mxu0 0.0
    %323 = vmatpush1.msra.mxu0 %v217
    %324 = vmatprep.subr.mxu0 0.0
    %325 = vmatpush1.msra.mxu0 %v218
    %326 = vmatprep.subr.mxu0 0.0
    %327 = vmatpush1.msra.mxu0 0.0
    %328 = vmatprep.subr.mxu0 0.0
    %329 = vmatpush1.msra.mxu0 0.0
    %330 = vmatprep.subr.mxu0 0.0
    %331 = vmatpush1.msra.mxu0 0.0
    %332 = vmatprep.subr.mxu0 0.0
    %333 = vmatpush1.msra.mxu0 0.0
    %334 = vmatprep.subr.mxu0 0.0
    %335 = vmatpush1.msra.mxu0 0.0
    %336 = vmatprep.subr.mxu0 0.0
    %337 = vmatpush1.msra.mxu0 0.0
    %338 = vmatprep.subr.mxu0 0.0
    %339 = vmatpush1.msra.mxu0 0.0
    %340 = vmatprep.subr.mxu0 0.0
    %341 = vmatpush1.msra.mxu0 0.0
    %342 = vmatprep.subr.mxu0 0.0
    %343 = vmatpush1.msra.mxu0 0.0
    %344 = vmatprep.subr.mxu0 0.0
    %345 = vmatpush1.msra.mxu0 0.0
    %346 = vmatprep.subr.mxu0 0.0
    %347 = vmatpush1.msra.mxu0 0.0
    %348 = vmatprep.subr.mxu0 0.0
    %349 = vmatpush1.msra.mxu0 0.0
    %350 = vmatprep.subr.mxu0 0.0
    %351 = vmatpush1.msra.mxu0 0.0
    %352 = vmatprep.subr.mxu0 0.0
    %353 = vmatpush1.msra.mxu0 0.0
    %354 = vmatprep.subr.mxu0 0.0
    %355 = vmatpush1.msra.mxu0 0.0
    %356 = vmatprep.subr.mxu0 0.0
    %357 = vmatpush1.msra.mxu0 0.0
    %358 = vmatprep.subr.mxu0 0.0
    %359 = vmatpush1.msra.mxu0 0.0
    %360 = vmatprep.subr.mxu0 0.0
    %361 = vmatpush1.msra.mxu0 0.0
    %362 = vmatprep.mubr.f32.mxu0 0.0
    %363 = vmatmul.mubr.f32.gmra.mrb[0].mxu0 %v296
    %v364 = vpop.f32.mrb[0].mxu0
    %v365 = vadd.f32 1e-05, %v364
    %v366 = vpop.f32.mrb[0].mxu0
    %367 = vdwg.mxu0
    %v368 = vrsqrt.pop %v365
    %v369 = vmul.f32 %v293, %v368
    %v370 = vld [vmem:[%s4] sm:$0x1]
    %v372 = vlaneseq
    %v373 = vshrl.u32 %v372, 7
    %v374 = vsub.s32 0, %v373
    %v375 = vrot.slane %v370, %v374
    %v377 = vmul.f32 %v369, %v375
    %v378 = vld [vmem:[%s5] sm:$0x1]
    %v380 = vlaneseq
    %v381 = vshrl.u32 %v380, 7
    %v382 = vsub.s32 0, %v381
    %v383 = vrot.slane %v378, %v382
    %v385 = vadd.f32 %v377, %v383
    %v386 = vld [vmem:[%s6] sm:$0xff]
    %v387 = vld [vmem:[%s6 + $0x8] sm:$0xff]
    %v388 = vld [vmem:[%s6 + $0x10] sm:$0xff]
    %v389 = vld [vmem:[%s6 + $0x18] sm:$0xff]
    %v390 = vld [vmem:[%s6 + $0x20] sm:$0xff]
    %v391 = vld [vmem:[%s6 + $0x28] sm:$0xff]
    %v392 = vld [vmem:[%s6 + $0x30] sm:$0xff]
    %v393 = vld [vmem:[%s6 + $0x38] sm:$0xff]
    %v394 = vld [vmem:[%s6 + $0x40] sm:$0xff]
    %v395 = vld [vmem:[%s6 + $0x48] sm:$0xff]
    %v396 = vld [vmem:[%s6 + $0x50] sm:$0xff]
    %v397 = vld [vmem:[%s6 + $0x58] sm:$0xff]
    %v398 = vld [vmem:[%s6 + $0x60] sm:$0xff]
    %v399 = vld [vmem:[%s6 + $0x68] sm:$0xff]
    %v400 = vld [vmem:[%s7] sm:$0x1]
    %v402 = vlaneseq
    %v403 = vshrl.u32 %v402, 7
    %v404 = vsub.s32 0, %v403
    %v405 = vrot.slane %v400, %v404
    %v408 = vsel %vm219, %v385, 0
    %410 = vmatprep.subr.mxu0 0.0
    %411 = vmatpush1.msra.mxu0 %v386
    %412 = vmatprep.subr.mxu0 0.0
    %413 = vmatpush1.msra.mxu0 %v387
    %414 = vmatprep.subr.mxu0 0.0
    %415 = vmatpush1.msra.mxu0 %v388
    %416 = vmatprep.subr.mxu0 0.0
    %417 = vmatpush1.msra.mxu0 %v389
    %418 = vmatprep.subr.mxu0 0.0
    %419 = vmatpush1.msra.mxu0 %v390
    %420 = vmatprep.subr.mxu0 0.0
    %421 = vmatpush1.msra.mxu0 %v391
    %422 = vmatprep.subr.mxu0 0.0
    %423 = vmatpush1.msra.mxu0 %v392
    %424 = vmatprep.subr.mxu0 0.0
    %425 = vmatpush1.msra.mxu0 %v393
    %426 = vmatprep.subr.mxu0 0.0
    %427 = vmatpush1.msra.mxu0 %v394
    %428 = vmatprep.subr.mxu0 0.0
    %429 = vmatpush1.msra.mxu0 %v395
    %430 = vmatprep.subr.mxu0 0.0
    %431 = vmatpush1.msra.mxu0 %v396
    %432 = vmatprep.subr.mxu0 0.0
    %433 = vmatpush1.msra.mxu0 %v397
    %434 = vmatprep.subr.mxu0 0.0
    %435 = vmatpush1.msra.mxu0 %v398
    %436 = vmatprep.subr.mxu0 0.0
    %437 = vmatpush1.msra.mxu0 %v399
    %438 = vmatprep.subr.mxu0 0.0
    %439 = vmatpush1.msra.mxu0 0.0
    %440 = vmatprep.subr.mxu0 0.0
    %441 = vmatpush1.msra.mxu0 0.0
    %442 = vmatprep.subr.mxu0 0.0
    %443 = vmatpush1.msra.mxu0 0.0
    %444 = vmatprep.subr.mxu0 0.0
    %445 = vmatpush1.msra.mxu0 0.0
    %446 = vmatprep.subr.mxu0 0.0
    %447 = vmatpush1.msra.mxu0 0.0
    %448 = vmatprep.subr.mxu0 0.0
    %449 = vmatpush1.msra.mxu0 0.0
    %450 = vmatprep.subr.mxu0 0.0
    %451 = vmatpush1.msra.mxu0 0.0
    %452 = vmatprep.subr.mxu0 0.0
    %453 = vmatpush1.msra.mxu0 0.0
    %454 = vmatprep.subr.mxu0 0.0
    %455 = vmatpush1.msra.mxu0 0.0
    %456 = vmatprep.subr.mxu0 0.0
    %457 = vmatpush1.msra.mxu0 0.0
    %458 = vmatprep.subr.mxu0 0.0
    %459 = vmatpush1.msra.mxu0 0.0
    %460 = vmatprep.subr.mxu0 0.0
    %461 = vmatpush1.msra.mxu0 0.0
    %462 = vmatprep.subr.mxu0 0.0
    %463 = vmatpush1.msra.mxu0 0.0
    %464 = vmatprep.subr.mxu0 0.0
    %465 = vmatpush1.msra.mxu0 0.0
    %466 = vmatprep.subr.mxu0 0.0
    %467 = vmatpush1.msra.mxu0 0.0
    %468 = vmatprep.subr.mxu0 0.0
    %469 = vmatpush1.msra.mxu0 0.0
    %470 = vmatprep.subr.mxu0 0.0
    %471 = vmatpush1.msra.mxu0 0.0
    %472 = vmatprep.subr.mxu0 0.0
    %473 = vmatpush1.msra.mxu0 0.0
    %474 = vmatprep.mubr.f32.mxu0 0.0
    %475 = vmatmul.mubr.f32.gmra.mrb[0].mxu0 %v408
    %v476 = vpop.f32.mrb[0].mxu0
    %v477 = vadd.f32 %v405, %v476
    %v478 = vpop.f32.mrb[0].mxu0
    %479 = vdwg.mxu0
    %v480 = vmax.f32 %v477, 0.0
    %v481 = vld [vmem:[%s8] sm:$0xff]
    %v482 = vld [vmem:[%s8 + $0x8] sm:$0xff]
    %v483 = vld [vmem:[%s8 + $0x10] sm:$0xff]
    %v484 = vld [vmem:[%s8 + $0x18] sm:$0xff]
    %v485 = vld [vmem:[%s8 + $0x20] sm:$0xff]
    %v486 = vld [vmem:[%s8 + $0x28] sm:$0xff]
    %v487 = vld [vmem:[%s8 + $0x30] sm:$0xff]
    %v488 = vld [vmem:[%s8 + $0x38] sm:$0xff]
    %v489 = vld [vmem:[%s8 + $0x40] sm:$0xff]
    %v490 = vld [vmem:[%s8 + $0x48] sm:$0xff]
    %v491 = vld [vmem:[%s8 + $0x50] sm:$0xff]
    %v492 = vld [vmem:[%s8 + $0x58] sm:$0xff]
    %vm493 = vcmask 785408
    %v495 = vsel %vm493, %v480, 0
    %497 = vmatprep.subr.mxu0 0.0
    %498 = vmatpush1.msra.mxu0 %v481
    %499 = vmatprep.subr.mxu0 0.0
    %500 = vmatpush1.msra.mxu0 %v482
    %501 = vmatprep.subr.mxu0 0.0
    %502 = vmatpush1.msra.mxu0 %v483
    %503 = vmatprep.subr.mxu0 0.0
    %504 = vmatpush1.msra.mxu0 %v484
    %505 = vmatprep.subr.mxu0 0.0
    %506 = vmatpush1.msra.mxu0 %v485
    %507 = vmatprep.subr.mxu0 0.0
    %508 = vmatpush1.msra.mxu0 %v486
    %509 = vmatprep.subr.mxu0 0.0
    %510 = vmatpush1.msra.mxu0 %v487
    %511 = vmatprep.subr.mxu0 0.0
    %512 = vmatpush1.msra.mxu0 %v488
    %513 = vmatprep.subr.mxu0 0.0
    %514 = vmatpush1.msra.mxu0 %v489
    %515 = vmatprep.subr.mxu0 0.0
    %516 = vmatpush1.msra.mxu0 %v490
    %517 = vmatprep.subr.mxu0 0.0
    %518 = vmatpush1.msra.mxu0 %v491
    %519 = vmatprep.subr.mxu0 0.0
    %520 = vmatpush1.msra.mxu0 %v492
    %521 = vmatprep.subr.mxu0 0.0
    %522 = vmatpush1.msra.mxu0 0.0
    %523 = vmatprep.subr.mxu0 0.0
    %524 = vmatpush1.msra.mxu0 0.0
    %525 = vmatprep.subr.mxu0 0.0
    %526 = vmatpush1.msra.mxu0 0.0
    %527 = vmatprep.subr.mxu0 0.0
    %528 = vmatpush1.msra.mxu0 0.0
    %529 = vmatprep.subr.mxu0 0.0
    %530 = vmatpush1.msra.mxu0 0.0
    %531 = vmatprep.subr.mxu0 0.0
    %532 = vmatpush1.msra.mxu0 0.0
    %533 = vmatprep.subr.mxu0 0.0
    %534 = vmatpush1.msra.mxu0 0.0
    %535 = vmatprep.subr.mxu0 0.0
    %536 = vmatpush1.msra.mxu0 0.0
    %537 = vmatprep.subr.mxu0 0.0
    %538 = vmatpush1.msra.mxu0 0.0
    %539 = vmatprep.subr.mxu0 0.0
    %540 = vmatpush1.msra.mxu0 0.0
    %541 = vmatprep.subr.mxu0 0.0
    %542 = vmatpush1.msra.mxu0 0.0
    %543 = vmatprep.subr.mxu0 0.0
    %544 = vmatpush1.msra.mxu0 0.0
    %545 = vmatprep.subr.mxu0 0.0
    %546 = vmatpush1.msra.mxu0 0.0
    %547 = vmatprep.subr.mxu0 0.0
    %548 = vmatpush1.msra.mxu0 0.0
    %549 = vmatprep.subr.mxu0 0.0
    %550 = vmatpush1.msra.mxu0 0.0
    %551 = vmatprep.subr.mxu0 0.0
    %552 = vmatpush1.msra.mxu0 0.0
    %553 = vmatprep.subr.mxu0 0.0
    %554 = vmatpush1.msra.mxu0 0.0
    %555 = vmatprep.subr.mxu0 0.0
    %556 = vmatpush1.msra.mxu0 0.0
    %557 = vmatprep.subr.mxu0 0.0
    %558 = vmatpush1.msra.mxu0 0.0
    %559 = vmatprep.subr.mxu0 0.0
    %560 = vmatpush1.msra.mxu0 0.0
    %561 = vmatprep.mubr.f32.mxu0 0.0
    %562 = vmatmul.mubr.f32.gmra.mrb[0].mxu0 %v495
    %v563 = vpop.f32.mrb[0].mxu0
    %v564 = vadd.f32 0.0, %v563
    %v565 = vpop.f32.mrb[0].mxu0
    %566 = vdwg.mxu0
    %v567 = vsub.f32 %v480, %v564
    %v568 = vmul.f32 %v567, %v567
    %v570 = vsel %vm493, %v568, 0
    %572 = vmatprep.subr.mxu0 0.0
    %573 = vmatpush1.msra.mxu0 %v481
    %574 = vmatprep.subr.mxu0 0.0
    %575 = vmatpush1.msra.mxu0 %v482
    %576 = vmatprep.subr.mxu0 0.0
    %577 = vmatpush1.msra.mxu0 %v483
    %578 = vmatprep.subr.mxu0 0.0
    %579 = vmatpush1.msra.mxu0 %v484
    %580 = vmatprep.subr.mxu0 0.0
    %581 = vmatpush1.msra.mxu0 %v485
    %582 = vmatprep.subr.mxu0 0.0
    %583 = vmatpush1.msra.mxu0 %v486
    %584 = vmatprep.subr.mxu0 0.0
    %585 = vmatpush1.msra.mxu0 %v487
    %586 = vmatprep.subr.mxu0 0.0
    %587 = vmatpush1.msra.mxu0 %v488
    %588 = vmatprep.subr.mxu0 0.0
    %589 = vmatpush1.msra.mxu0 %v489
    %590 = vmatprep.subr.mxu0 0.0
    %591 = vmatpush1.msra.mxu0 %v490
    %592 = vmatprep.subr.mxu0 0.0
    %593 = vmatpush1.msra.mxu0 %v491
    %594 = vmatprep.subr.mxu0 0.0
    %595 = vmatpush1.msra.mxu0 %v492
    %596 = vmatprep.subr.mxu0 0.0
    %597 = vmatpush1.msra.mxu0 0.0
    %598 = vmatprep.subr.mxu0 0.0
    %599 = vmatpush1.msra.mxu0 0.0
    %600 = vmatprep.subr.mxu0 0.0
    %601 = vmatpush1.msra.mxu0 0.0
    %602 = vmatprep.subr.mxu0 0.0
    %603 = vmatpush1.msra.mxu0 0.0
    %604 = vmatprep.subr.mxu0 0.0
    %605 = vmatpush1.msra.mxu0 0.0
    %606 = vmatprep.subr.mxu0 0.0
    %607 = vmatpush1.msra.mxu0 0.0
    %608 = vmatprep.subr.mxu0 0.0
    %609 = vmatpush1.msra.mxu0 0.0
    %610 = vmatprep.subr.mxu0 0.0
    %611 = vmatpush1.msra.mxu0 0.0
    %612 = vmatprep.subr.mxu0 0.0
    %613 = vmatpush1.msra.mxu0 0.0
    %614 = vmatprep.subr.mxu0 0.0
    %615 = vmatpush1.msra.mxu0 0.0
    %616 = vmatprep.subr.mxu0 0.0
    %617 = vmatpush1.msra.mxu0 0.0
    %618 = vmatprep.subr.mxu0 0.0
    %619 = vmatpush1.msra.mxu0 0.0
    %620 = vmatprep.subr.mxu0 0.0
    %621 = vmatpush1.msra.mxu0 0.0
    %622 = vmatprep.subr.mxu0 0.0
    %623 = vmatpush1.msra.mxu0 0.0
    %624 = vmatprep.subr.mxu0 0.0
    %625 = vmatpush1.msra.mxu0 0.0
    %626 = vmatprep.subr.mxu0 0.0
    %627 = vmatpush1.msra.mxu0 0.0
    %628 = vmatprep.subr.mxu0 0.0
    %629 = vmatpush1.msra.mxu0 0.0
    %630 = vmatprep.subr.mxu0 0.0
    %631 = vmatpush1.msra.mxu0 0.0
    %632 = vmatprep.subr.mxu0 0.0
    %633 = vmatpush1.msra.mxu0 0.0
    %634 = vmatprep.subr.mxu0 0.0
    %635 = vmatpush1.msra.mxu0 0.0
    %636 = vmatprep.mubr.f32.mxu0 0.0
    %637 = vmatmul.mubr.f32.gmra.mrb[0].mxu0 %v570
    %v638 = vpop.f32.mrb[0].mxu0
    %v639 = vadd.f32 1e-05, %v638
    %v640 = vpop.f32.mrb[0].mxu0
    %641 = vdwg.mxu0
    %v642 = vrsqrt.pop %v639
    %v643 = vmul.f32 %v567, %v642
    %v644 = vld [vmem:[%s9] sm:$0x1]
    %v646 = vlaneseq
    %v647 = vshrl.u32 %v646, 7
    %v648 = vsub.s32 0, %v647
    %v649 = vrot.slane %v644, %v648
    %v651 = vmul.f32 %v643, %v649
    %v652 = vld [vmem:[%s10] sm:$0x1]
    %v654 = vlaneseq
    %v655 = vshrl.u32 %v654, 7
    %v656 = vsub.s32 0, %v655
    %v657 = vrot.slane %v652, %v656
    %v659 = vadd.f32 %v651, %v657
    %v660 = vld [vmem:[%s11] sm:$0xff]
    %v661 = vld [vmem:[%s11 + $0x8] sm:$0xff]
    %v662 = vld [vmem:[%s11 + $0x10] sm:$0xff]
    %v663 = vld [vmem:[%s11 + $0x18] sm:$0xff]
    %v664 = vld [vmem:[%s11 + $0x20] sm:$0xff]
    %v665 = vld [vmem:[%s11 + $0x28] sm:$0xff]
    %v666 = vld [vmem:[%s11 + $0x30] sm:$0xff]
    %v667 = vld [vmem:[%s11 + $0x38] sm:$0xff]
    %v668 = vld [vmem:[%s11 + $0x40] sm:$0xff]
    %v669 = vld [vmem:[%s11 + $0x48] sm:$0xff]
    %v670 = vld [vmem:[%s11 + $0x50] sm:$0xff]
    %v671 = vld [vmem:[%s11 + $0x58] sm:$0xff]
    %v672 = vld [vmem:[#allocation2] sm:$0x1]
    %v674 = vlaneseq
    %v675 = vshrl.u32 %v674, 7
    %v676 = vsub.s32 0, %v675
    %v677 = vrot.slane %v672, %v676
    %v680 = vsel %vm493, %v659, 0
    %682 = vmatprep.subr.mxu0 0.0
    %683 = vmatpush1.msra.mxu0 %v660
    %684 = vmatprep.subr.mxu0 0.0
    %685 = vmatpush1.msra.mxu0 %v661
    %686 = vmatprep.subr.mxu0 0.0
    %687 = vmatpush1.msra.mxu0 %v662
    %688 = vmatprep.subr.mxu0 0.0
    %689 = vmatpush1.msra.mxu0 %v663
    %690 = vmatprep.subr.mxu0 0.0
    %691 = vmatpush1.msra.mxu0 %v664
    %692 = vmatprep.subr.mxu0 0.0
    %693 = vmatpush1.msra.mxu0 %v665
    %694 = vmatprep.subr.mxu0 0.0
    %695 = vmatpush1.msra.mxu0 %v666
    %696 = vmatprep.subr.mxu0 0.0
    %697 = vmatpush1.msra.mxu0 %v667
    %698 = vmatprep.subr.mxu0 0.0
    %699 = vmatpush1.msra.mxu0 %v668
    %700 = vmatprep.subr.mxu0 0.0
    %701 = vmatpush1.msra.mxu0 %v669
    %702 = vmatprep.subr.mxu0 0.0
    %703 = vmatpush1.msra.mxu0 %v670
    %704 = vmatprep.subr.mxu0 0.0
    %705 = vmatpush1.msra.mxu0 %v671
    %706 = vmatprep.subr.mxu0 0.0
    %707 = vmatpush1.msra.mxu0 0.0
    %708 = vmatprep.subr.mxu0 0.0
    %709 = vmatpush1.msra.mxu0 0.0
    %710 = vmatprep.subr.mxu0 0.0
    %711 = vmatpush1.msra.mxu0 0.0
    %712 = vmatprep.subr.mxu0 0.0
    %713 = vmatpush1.msra.mxu0 0.0
    %714 = vmatprep.subr.mxu0 0.0
    %715 = vmatpush1.msra.mxu0 0.0
    %716 = vmatprep.subr.mxu0 0.0
    %717 = vmatpush1.msra.mxu0 0.0
    %718 = vmatprep.subr.mxu0 0.0
    %719 = vmatpush1.msra.mxu0 0.0
    %720 = vmatprep.subr.mxu0 0.0
    %721 = vmatpush1.msra.mxu0 0.0
    %722 = vmatprep.subr.mxu0 0.0
    %723 = vmatpush1.msra.mxu0 0.0
    %724 = vmatprep.subr.mxu0 0.0
    %725 = vmatpush1.msra.mxu0 0.0
    %726 = vmatprep.subr.mxu0 0.0
    %727 = vmatpush1.msra.mxu0 0.0
    %728 = vmatprep.subr.mxu0 0.0
    %729 = vmatpush1.msra.mxu0 0.0
    %730 = vmatprep.subr.mxu0 0.0
    %731 = vmatpush1.msra.mxu0 0.0
    %732 = vmatprep.subr.mxu0 0.0
    %733 = vmatpush1.msra.mxu0 0.0
    %734 = vmatprep.subr.mxu0 0.0
    %735 = vmatpush1.msra.mxu0 0.0
    %736 = vmatprep.subr.mxu0 0.0
    %737 = vmatpush1.msra.mxu0 0.0
    %738 = vmatprep.subr.mxu0 0.0
    %739 = vmatpush1.msra.mxu0 0.0
    %740 = vmatprep.subr.mxu0 0.0
    %741 = vmatpush1.msra.mxu0 0.0
    %742 = vmatprep.subr.mxu0 0.0
    %743 = vmatpush1.msra.mxu0 0.0
    %744 = vmatprep.subr.mxu0 0.0
    %745 = vmatpush1.msra.mxu0 0.0
    %746 = vmatprep.mubr.f32.mxu0 0.0
    %747 = vmatmul.mubr.f32.gmra.mrb[0].mxu0 %v680
    %v748 = vpop.f32.mrb[0].mxu0
    %v749 = vadd.f32 %v677, %v748
    %v750 = vpop.f32.mrb[0].mxu0
    %751 = vdwg.mxu0
    %v752 = vmax.f32 %v749, 0.0
    %vm753 = vcmask 261120
    %v754 = vsel %vm753, %v752, 0.0
    %755 = vadd.xlane.f32.xlu0 %v754
    %v756 = vpop.xlane.xlu0 %755
    %v757 = vrcp.pop 32.0
    %v758 = vmul.f32 %v756, %v757
    %v759 = vsub.f32 %v752, %v758
    %v760 = vmul.f32 %v759, %v759
    %v761 = vsel %vm753, %v760, 0.0
    %762 = vadd.xlane.f32.xlu0 %v761
    %v763 = vpop.xlane.xlu0 %762
    %v764 = vmul.f32 %v763, %v757
    %v765 = vadd.f32 %v764, 1e-05
    %v766 = vrsqrt.pop %v765
    %v767 = vmul.f32 %v759, %v766
    %v768 = vld [vmem:[%s13] sm:$0x1]
    %v770 = vlaneseq
    %v771 = vshrl.u32 %v770, 7
    %v772 = vsub.s32 0, %v771
    %v773 = vrot.slane %v768, %v772
    %v775 = vmul.f32 %v767, %v773
    %v776 = vld [vmem:[%s14] sm:$0x1]
    %v778 = vlaneseq
    %v779 = vshrl.u32 %v778, 7
    %v780 = vsub.s32 0, %v779
    %v781 = vrot.slane %v776, %v780
    %v783 = vadd.f32 %v775, %v781
    %v784 = vld [vmem:[%s15] sm:$0xff]
    %v785 = vld [vmem:[%s15 + $0x8] sm:$0xff]
    %v786 = vld [vmem:[%s15 + $0x10] sm:$0xff]
    %v787 = vld [vmem:[%s15 + $0x18] sm:$0xff]
    %v788 = vld [vmem:[#allocation6] sm:$0x1]
    %v790 = vlaneseq
    %v791 = vshrl.u32 %v790, 7
    %v792 = vsub.s32 0, %v791
    %v793 = vrot.slane %v788, %v792
    %v796 = vsel %vm753, %v783, 0
    %798 = vmatprep.subr.mxu0 0.0
    %799 = vmatpush1.msra.mxu0 %v784
    %800 = vmatprep.subr.mxu0 0.0
    %801 = vmatpush1.msra.mxu0 %v785
    %802 = vmatprep.subr.mxu0 0.0
    %803 = vmatpush1.msra.mxu0 %v786
    %804 = vmatprep.subr.mxu0 0.0
    %805 = vmatpush1.msra.mxu0 %v787
    %806 = vmatprep.subr.mxu0 0.0
    %807 = vmatpush1.msra.mxu0 0.0
    %808 = vmatprep.subr.mxu0 0.0
    %809 = vmatpush1.msra.mxu0 0.0
    %810 = vmatprep.subr.mxu0 0.0
    %811 = vmatpush1.msra.mxu0 0.0
    %812 = vmatprep.subr.mxu0 0.0
    %813 = vmatpush1.msra.mxu0 0.0
    %814 = vmatprep.subr.mxu0 0.0
    %815 = vmatpush1.msra.mxu0 0.0
    %816 = vmatprep.subr.mxu0 0.0
    %817 = vmatpush1.msra.mxu0 0.0
    %818 = vmatprep.subr.mxu0 0.0
    %819 = vmatpush1.msra.mxu0 0.0
    %820 = vmatprep.subr.mxu0 0.0
    %821 = vmatpush1.msra.mxu0 0.0
    %822 = vmatprep.subr.mxu0 0.0
    %823 = vmatpush1.msra.mxu0 0.0
    %824 = vmatprep.subr.mxu0 0.0
    %825 = vmatpush1.msra.mxu0 0.0
    %826 = vmatprep.subr.mxu0 0.0
    %827 = vmatpush1.msra.mxu0 0.0
    %828 = vmatprep.subr.mxu0 0.0
    %829 = vmatpush1.msra.mxu0 0.0
    %830 = vmatprep.subr.mxu0 0.0
    %831 = vmatpush1.msra.mxu0 0.0
    %832 = vmatprep.subr.mxu0 0.0
    %833 = vmatpush1.msra.mxu0 0.0
    %834 = vmatprep.subr.mxu0 0.0
    %835 = vmatpush1.msra.mxu0 0.0
    %836 = vmatprep.subr.mxu0 0.0
    %837 = vmatpush1.msra.mxu0 0.0
    %838 = vmatprep.subr.mxu0 0.0
    %839 = vmatpush1.msra.mxu0 0.0
    %840 = vmatprep.subr.mxu0 0.0
    %841 = vmatpush1.msra.mxu0 0.0
    %842 = vmatprep.subr.mxu0 0.0
    %843 = vmatpush1.msra.mxu0 0.0
    %844 = vmatprep.subr.mxu0 0.0
    %845 = vmatpush1.msra.mxu0 0.0
    %846 = vmatprep.subr.mxu0 0.0
    %847 = vmatpush1.msra.mxu0 0.0
    %848 = vmatprep.subr.mxu0 0.0
    %849 = vmatpush1.msra.mxu0 0.0
    %850 = vmatprep.subr.mxu0 0.0
    %851 = vmatpush1.msra.mxu0 0.0
    %852 = vmatprep.subr.mxu0 0.0
    %853 = vmatpush1.msra.mxu0 0.0
    %854 = vmatprep.subr.mxu0 0.0
    %855 = vmatpush1.msra.mxu0 0.0
    %856 = vmatprep.subr.mxu0 0.0
    %857 = vmatpush1.msra.mxu0 0.0
    %858 = vmatprep.subr.mxu0 0.0
    %859 = vmatpush1.msra.mxu0 0.0
    %860 = vmatprep.subr.mxu0 0.0
    %861 = vmatpush1.msra.mxu0 0.0
    %862 = vmatprep.mubr.f32.mxu0 0.0
    %863 = vmatmul.mubr.f32.gmra.mrb[0].mxu0 %v796
    %v864 = vpop.f32.mrb[0].mxu0
    %v865 = vadd.f32 %v793, %v864
    %v866 = vpop.f32.mrb[0].mxu0
    %867 = vdwg.mxu0
    %869 = vrot.lane.b32.xlu0 %v865, 96
    %v870 = vpop.permute.xlu0 %869
    %vm871 = vcmask 130048
    %v872 = vsel %vm871, %v865, 0
    %v874 = vsel %vm871, %v870, 0
    %876 = vmatprep.subr.mxu0 0.0
    %877 = vmatpush1.xpose.msra.mxu0 %v874
    %878 = vmatprep.subr.mxu0 0.0
    %879 = vmatpush1.xpose.msra.mxu0 0.0
    %880 = vmatprep.subr.mxu0 0.0
    %881 = vmatpush1.xpose.msra.mxu0 0.0
    %882 = vmatprep.subr.mxu0 0.0
    %883 = vmatpush1.xpose.msra.mxu0 0.0
    %884 = vmatprep.subr.mxu0 0.0
    %885 = vmatpush1.xpose.msra.mxu0 0.0
    %886 = vmatprep.subr.mxu0 0.0
    %887 = vmatpush1.xpose.msra.mxu0 0.0
    %888 = vmatprep.subr.mxu0 0.0
    %889 = vmatpush1.xpose.msra.mxu0 0.0
    %890 = vmatprep.subr.mxu0 0.0
    %891 = vmatpush1.xpose.msra.mxu0 0.0
    %892 = vmatprep.subr.mxu0 0.0
    %893 = vmatpush1.xpose.msra.mxu0 0.0
    %894 = vmatprep.subr.mxu0 0.0
    %895 = vmatpush1.xpose.msra.mxu0 0.0
    %896 = vmatprep.subr.mxu0 0.0
    %897 = vmatpush1.xpose.msra.mxu0 0.0
    %898 = vmatprep.subr.mxu0 0.0
    %899 = vmatpush1.xpose.msra.mxu0 0.0
    %900 = vmatprep.subr.mxu0 0.0
    %901 = vmatpush1.xpose.msra.mxu0 0.0
    %902 = vmatprep.subr.mxu0 0.0
    %903 = vmatpush1.xpose.msra.mxu0 0.0
    %904 = vmatprep.subr.mxu0 0.0
    %905 = vmatpush1.xpose.msra.mxu0 0.0
    %906 = vmatprep.subr.mxu0 0.0
    %907 = vmatpush1.xpose.msra.mxu0 0.0
    %908 = vmatprep.subr.mxu0 0.0
    %909 = vmatpush1.xpose.msra.mxu0 0.0
    %910 = vmatprep.subr.mxu0 0.0
    %911 = vmatpush1.xpose.msra.mxu0 0.0
    %912 = vmatprep.subr.mxu0 0.0
    %913 = vmatpush1.xpose.msra.mxu0 0.0
    %914 = vmatprep.subr.mxu0 0.0
    %915 = vmatpush1.xpose.msra.mxu0 0.0
    %916 = vmatprep.subr.mxu0 0.0
    %917 = vmatpush1.xpose.msra.mxu0 0.0
    %918 = vmatprep.subr.mxu0 0.0
    %919 = vmatpush1.xpose.msra.mxu0 0.0
    %920 = vmatprep.subr.mxu0 0.0
    %921 = vmatpush1.xpose.msra.mxu0 0.0
    %922 = vmatprep.subr.mxu0 0.0
    %923 = vmatpush1.xpose.msra.mxu0 0.0
    %924 = vmatprep.subr.mxu0 0.0
    %925 = vmatpush1.xpose.msra.mxu0 0.0
    %926 = vmatprep.subr.mxu0 0.0
    %927 = vmatpush1.xpose.msra.mxu0 0.0
    %928 = vmatprep.subr.mxu0 0.0
    %929 = vmatpush1.xpose.msra.mxu0 0.0
    %930 = vmatprep.subr.mxu0 0.0
    %931 = vmatpush1.xpose.msra.mxu0 0.0
    %932 = vmatprep.subr.mxu0 0.0
    %933 = vmatpush1.xpose.msra.mxu0 0.0
    %934 = vmatprep.subr.mxu0 0.0
    %935 = vmatpush1.xpose.msra.mxu0 0.0
    %936 = vmatprep.subr.mxu0 0.0
    %937 = vmatpush1.xpose.msra.mxu0 0.0
    %938 = vmatprep.subr.mxu0 0.0
    %939 = vmatpush1.xpose.msra.mxu0 0.0
    %940 = vmatprep.mubr.f32.mxu0 0.0
    %941 = vmatmul.mubr.f32.gmra.mrb[0].mxu0 %v872
    %v942 = vpop.f32.mrb[0].mxu0
    %v943 = vadd.f32 0.0, %v942
    %v944 = vpop.f32.mrb[0].mxu0
    %945 = vdwg.mxu0
    %v946 = vmul.f32 %v943, 0.25
    %vm947 = vcmask 64512
    %v948 = vsel %vm947, %v946, -inf
    %949 = vmax.xlane.f32.xlu0 %v948
    %v950 = vpop.xlane.xlu0 %949
    %v951 = vsub.f32 %v946, %v950
    %v952 = vmul.f32 %v951, 1.442695
    %v953 = vpow.pop %v952
    %v954 = vsel %vm947, %v953, 0.0
    %955 = vadd.xlane.f32.xlu0 %v954
    %v956 = vpop.xlane.xlu0 %955
    %v957 = vrcp.pop %v956
    %v958 = vmul.f32 %v953, %v957
    %959 = vst.msk [vmem:[#allocation11] sm:$0xff] %vm947, %v958
    %960 = vrot.lane.b32.xlu0 %v865, 112
    %v961 = vpop.permute.xlu0 %960
    %962 = vrot.lane.b32.xlu0 %v865, 80
    %v963 = vpop.permute.xlu0 %962
    %v964 = vsel %vm871, %v961, 0
    %v966 = vsel %vm871, %v963, 0
    %968 = vmatprep.subr.mxu0 0.0
    %969 = vmatpush1.xpose.msra.mxu0 %v966
    %970 = vmatprep.subr.mxu0 0.0
    %971 = vmatpush1.xpose.msra.mxu0 0.0
    %972 = vmatprep.subr.mxu0 0.0
    %973 = vmatpush1.xpose.msra.mxu0 0.0
    %974 = vmatprep.subr.mxu0 0.0
    %975 = vmatpush1.xpose.msra.mxu0 0.0
    %976 = vmatprep.subr.mxu0 0.0
    %977 = vmatpush1.xpose.msra.mxu0 0.0
    %978 = vmatprep.subr.mxu0 0.0
    %979 = vmatpush1.xpose.msra.mxu0 0.0
    %980 = vmatprep.subr.mxu0 0.0
    %981 = vmatpush1.xpose.msra.mxu0 0.0
    %982 = vmatprep.subr.mxu0 0.0
    %983 = vmatpush1.xpose.msra.mxu0 0.0
    %984 = vmatprep.subr.mxu0 0.0
    %985 = vmatpush1.xpose.msra.mxu0 0.0
    %986 = vmatprep.subr.mxu0 0.0
    %987 = vmatpush1.xpose.msra.mxu0 0.0
    %988 = vmatprep.subr.mxu0 0.0
    %989 = vmatpush1.xpose.msra.mxu0 0.0
    %990 = vmatprep.subr.mxu0 0.0
    %991 = vmatpush1.xpose.msra.mxu0 0.0
    %992 = vmatprep.subr.mxu0 0.0
    %993 = vmatpush1.xpose.msra.mxu0 0.0
    %994 = vmatprep.subr.mxu0 0.0
    %995 = vmatpush1.xpose.msra.mxu0 0.0
    %996 = vmatprep.subr.mxu0 0.0
    %997 = vmatpush1.xpose.msra.mxu0 0.0
    %998 = vmatprep.subr.mxu0 0.0
    %999 = vmatpush1.xpose.msra.mxu0 0.0
    %1000 = vmatprep.subr.mxu0 0.0
    %1001 = vmatpush1.xpose.msra.mxu0 0.0
    %1002 = vmatprep.subr.mxu0 0.0
    %1003 = vmatpush1.xpose.msra.mxu0 0.0
    %1004 = vmatprep.subr.mxu0 0.0
    %1005 = vmatpush1.xpose.msra.mxu0 0.0
    %1006 = vmatprep.subr.mxu0 0.0
    %1007 = vmatpush1.xpose.msra.mxu0 0.0
    %1008 = vmatprep.subr.mxu0 0.0
    %1009 = vmatpush1.xpose.msra.mxu0 0.0
    %1010 = vmatprep.subr.mxu0 0.0
    %1011 = vmatpush1.xpose.msra.mxu0 0.0
    %1012 = vmatprep.subr.mxu0 0.0
    %1013 = vmatpush1.xpose.msra.mxu0 0.0
    %1014 = vmatprep.subr.mxu0 0.0
    %1015 = vmatpush1.xpose.msra.mxu0 0.0
    %1016 = vmatprep.subr.mxu0 0.0
    %1017 = vmatpush1.xpose.msra.mxu0 0.0
    %1018 = vmatprep.subr.mxu0 0.0
    %1019 = vmatpush1.xpose.msra.mxu0 0.0
    %1020 = vmatprep.subr.mxu0 0.0
    %1021 = vmatpush1.xpose.msra.mxu0 0.0
    %1022 = vmatprep.subr.mxu0 0.0
    %1023 = vmatpush1.xpose.msra.mxu0 0.0
    %1024 = vmatprep.subr.mxu0 0.0
    %1025 = vmatpush1.xpose.msra.mxu0 0.0
    %1026 = vmatprep.subr.mxu0 0.0
    %1027 = vmatpush1.xpose.msra.mxu0 0.0
    %1028 = vmatprep.subr.mxu0 0.0
    %1029 = vmatpush1.xpose.msra.mxu0 0.0
    %1030 = vmatprep.subr.mxu0 0.0
    %1031 = vmatpush1.xpose.msra.mxu0 0.0
    %1032 = vmatprep.mubr.f32.mxu0 0.0
    %1033 = vmatmul.mubr.f32.gmra.mrb[0].mxu0 %v964
    %v1034 = vpop.f32.mrb[0].mxu0
    %v1035 = vadd.f32 0.0, %v1034
    %v1036 = vpop.f32.mrb[0].mxu0
    %1037 = vdwg.mxu0
    %v1038 = vmul.f32 %v1035, 0.25
    %v1039 = vsel %vm947, %v1038, -inf
    %1040 = vmax.xlane.f32.xlu0 %v1039
    %v1041 = vpop.xlane.xlu0 %1040
    %v1042 = vsub.f32 %v1038, %v1041
    %v1043 = vmul.f32 %v1042, 1.442695
    %v1044 = vpow.pop %v1043
    %v1045 = vsel %vm947, %v1044, 0.0
    %1046 = vadd.xlane.f32.xlu0 %v1045
    %v1047 = vpop.xlane.xlu0 %1046
    %v1048 = vrcp.pop %v1047
    %v1049 = vmul.f32 %v1044, %v1048
    %s1050 = scalar_lea.vmem [#allocation11], 8
    %1051 = vst.msk [vmem:[%s1050] sm:$0xff] %vm947, %v1049
    %v1052 = vadd.f32 %v946, %v1038
    %v1053 = vmul.f32 %v1052, 0.5
    %s1054 = sld [smem:[#allocation8]]
    %v1055 = vstv %s1054
    %v1056 = vmul.f32 %v1053, %v1055
    %s1057 = sld [smem:[#allocation9]]
    %v1058 = vstv %s1057
    %v1059 = vadd.f32 %v1056, %v1058
    %1060 = vst.msk [vmem:[%s19] sm:$0xff] %vm947, %v1059
    %s1061 = sld [smem:[#allocation8 + $0x1]]
    %v1062 = vstv %s1061
    %v1063 = vmul.f32 %v1053, %v1062
    %s1064 = sld [smem:[#allocation9 + $0x1]]
    %v1065 = vstv %s1064
    %v1066 = vadd.f32 %v1063, %v1065
    %s1067 = scalar_lea.vmem %s19, 8
    %1068 = vst.msk [vmem:[%s1067] sm:$0xff] %vm947, %v1066
    // Predicated region
    $region94: #{attention_graph_learning_forward.1} parent=1 // pred_check
      _
    $region95: #{attention_graph_learning_forward.1} parent=1 // pred_check_branch
      %1070 = sbr.rel (0) target = $region97
    $region96: #{attention_graph_learning_forward.1} parent=1 // pred_region
      _
    $region97: #{attention_graph_learning_forward.1} parent=1 // pred_fallthru
      _
    // Predicated region
    $region98: #{attention_graph_learning_forward.1} parent=1 // pred_check
      _
    $region99: #{attention_graph_learning_forward.1} parent=1 // pred_check_branch
      %1072 = sbr.rel (0) target = $region101
    $region100: #{attention_graph_learning_forward.1} parent=1 // pred_region
      %s1074 = ssub.s32 256, 256
      %1075 = vsyncadd [#allocation4], %s1074
      %s1076 = sshll.u32 [#allocation11], 4
      %s1077 = int_to_ptr.vmem [resolvable:$true] %s1076
      %1082 = dma.vmem_to_hbm [thread:$0]  %s1077, 256, %s20, [#allocation4], 128, 128, 8
    $region101: #{attention_graph_learning_forward.1} parent=1 // pred_fallthru
      _
    // Predicated region
    $region102: #{attention_graph_learning_forward.1} parent=1 // pred_check
      _
    $region103: #{attention_graph_learning_forward.1} parent=1 // pred_check_branch
      %1084 = sbr.rel (0) target = $region105
    $region104: #{attention_graph_learning_forward.1} parent=1 // pred_region
      _
    $region105: #{attention_graph_learning_forward.1} parent=1 // pred_fallthru
      _
    // Predicated region
    $region106: #{attention_graph_learning_forward.1} parent=1 // pred_check
      _
    $region107: #{attention_graph_learning_forward.1} parent=1 // pred_check_branch
      %1086 = sbr.rel (0) target = $region109
    $region108: #{attention_graph_learning_forward.1} parent=1 // pred_region
      %1087 = dma.done [#allocation4], 256
    $region109: #{attention_graph_learning_forward.1} parent=1 // pred_fallthru
      _
    %1088 = vsyncpa [#allocation3], 1
    %1089 = vsyncpa [#allocation7], 1
    %1090 = vsyncpa [#allocation4], 1
    %1091 = vsyncpa [#allocation5], 1
    %1092 = vsyncpa [#allocation10], 1

</llo_original>
